<compile_context>
chip_gen: v5e
topology: v5e:2x2
jax: 0.10.0
libtpu: 0.0.40
codegen_flags: <defaults>
</compile_context>

<pallas_src>
import math
from functools import partial

import jax
import jax.numpy as jnp
from jax.experimental import pallas as pl
from jax.experimental.pallas import tpu as pltpu


# ----------------------------------------------------------------------------
# Fused Pallas kernel: all encoder layers + final norm + last-token slice
# ----------------------------------------------------------------------------
def _fused_encoder_kernel(nhead, head_dim, apply_final_norm,
                          x_ref, mask_ref,
                          wq_ref, wk_ref, wv_ref, bq_ref, bk_ref, bv_ref,
                          wo_ref, bo_ref, g1_ref, be1_ref,
                          w1_ref, b1_ref, w2_ref, b2_ref, g2_ref, be2_ref,
                          gf_ref, bf_ref,
                          o_ref, x_scr):
    """Grid = (batch, layer). One post-norm TransformerEncoderLayer per step."""
    l = pl.program_id(1)
    H, hd = nhead, head_dim
    S, E = x_scr.shape
    eps = jnp.float32(1e-5)

    # Load this batch element's embeddings into the resident VMEM slab once.
    @pl.when(l == 0)
    def _():
        x_scr[...] = x_ref[0]

    x = x_scr[...]                                              # (S, E) f32
    # key padding mask: 1.0 = pad -> large negative additive bias on key axis
    key_bias = (mask_ref[0] * jnp.float32(-1e30))[None]         # (1, 1, S) f32

    # ---- multi-head self-attention: heads batched on the leading dim ----
    xb = jnp.broadcast_to(x.astype(jnp.bfloat16)[None], (H, S, E))      # (H, S, E)
    q = jnp.einsum('hse,hed->hsd', xb, wq_ref[0],
                   preferred_element_type=jnp.float32) + bq_ref[0]      # (H, S, hd)
    k = jnp.einsum('hse,hed->hsd', xb, wk_ref[0],
                   preferred_element_type=jnp.float32) + bk_ref[0]
    v = jnp.einsum('hse,hed->hsd', xb, wv_ref[0],
                   preferred_element_type=jnp.float32) + bv_ref[0]

    scale = jnp.float32(1.0 / math.sqrt(head_dim))
    s = jnp.einsum('hqd,hkd->hqk', q.astype(jnp.bfloat16), k.astype(jnp.bfloat16),
                   preferred_element_type=jnp.float32) * scale + key_bias   # (H, S, S)
    s = s - jnp.max(s, axis=-1, keepdims=True)
    p = jnp.exp(s)
    p = p * pl.reciprocal(jnp.sum(p, axis=-1, keepdims=True), approx=True)
    ctx = jnp.einsum('hqk,hkd->hqd', p.astype(jnp.bfloat16), v.astype(jnp.bfloat16),
                     preferred_element_type=jnp.float32)                    # (H, S, hd)
    attn = jnp.einsum('hqd,hde->hqe', ctx.astype(jnp.bfloat16), wo_ref[0],
                      preferred_element_type=jnp.float32)                   # (H, S, E)
    attn_out = jnp.sum(attn, axis=0) + bo_ref[0]                            # (S, E)

    # ---- residual + LayerNorm 1 (post-norm) ----
    x1 = x + attn_out
    mu = jnp.mean(x1, axis=-1, keepdims=True)
    var = jnp.mean(jnp.square(x1 - mu), axis=-1, keepdims=True)
    x1 = (x1 - mu) * jax.lax.rsqrt(var + eps) * g1_ref[0] + be1_ref[0]

    # ---- feed-forward (ReLU) ----
    h1 = jnp.dot(x1.astype(jnp.bfloat16), w1_ref[0],
                 preferred_element_type=jnp.float32) + b1_ref[0]
    h1 = jnp.maximum(h1, 0.0)
    h2 = jnp.dot(h1.astype(jnp.bfloat16), w2_ref[0],
                 preferred_element_type=jnp.float32) + b2_ref[0]

    # ---- residual + LayerNorm 2 ----
    x2 = x1 + h2
    mu2 = jnp.mean(x2, axis=-1, keepdims=True)
    var2 = jnp.mean(jnp.square(x2 - mu2), axis=-1, keepdims=True)
    x2 = (x2 - mu2) * jax.lax.rsqrt(var2 + eps) * g2_ref[0] + be2_ref[0]

    x_scr[...] = x2                                              # carry to next layer

    # Only the last token is ever consumed: write it (and fuse the final norm)
    # on the last layer iteration only.
    @pl.when(l == pl.num_programs(1) - 1)
    def _():
        row = x2[-1:, :]                                         # (1, E)  == X[-1, ...]
        if apply_final_norm:
            muF = jnp.mean(row, axis=-1, keepdims=True)
            varF = jnp.mean(jnp.square(row - muF), axis=-1, keepdims=True)
            row = (row - muF) * jax.lax.rsqrt(varF + eps) * gf_ref[...] + bf_ref[...]
        o_ref[0] = row


# ----------------------------------------------------------------------------
# Wrapper
# ----------------------------------------------------------------------------
def seq_encoder_forward(tokens, pad_mask, params, cfg):
    """tokens: (S, B) int32; pad_mask: (B, S) bool (True = padded key)."""
    S, B = tokens.shape
    E, H = cfg["emb_size"], cfg["nhead"]
    F, L = cfg["dim_feedforward"], cfg["num_layers"]
    hd = E // H

    # Transpose the tiny int32 tokens (not the f32 embeddings); gather straight
    # into the (B, S, E) kernel layout.
    x = jnp.take(params["embedding"], tokens.T, axis=0).astype(jnp.float32)   # (B, S, E)
    mask3 = pad_mask.astype(jnp.float32)[:, None, :]                          # (B, 1, S)

    p = params
    weights = [p["wq"], p["wk"], p["wv"], p["bq"], p["bk"], p["bv"],
               p["wo"], p["bo"], p["g1"], p["be1"],
               p["w1"], p["b1"], p["w2"], p["b2"], p["g2"], p["be2"],
               p["gf"], p["bf"]]

    def act_map(b, l): return (b, 0, 0)
    def w4_map(b, l): return (l, 0, 0, 0)
    def w3_map(b, l): return (l, 0, 0)
    def const_map(b, l): return (0, 0)

    in_specs = [
        pl.BlockSpec((1, S, E), act_map),          # embeddings
        pl.BlockSpec((1, 1, S), act_map),          # key-padding mask
        pl.BlockSpec((1, H, E, hd), w4_map),       # wq (per-head)
        pl.BlockSpec((1, H, E, hd), w4_map),       # wk
        pl.BlockSpec((1, H, E, hd), w4_map),       # wv
        pl.BlockSpec((1, H, 1, hd), w4_map),       # bq
        pl.BlockSpec((1, H, 1, hd), w4_map),       # bk
        pl.BlockSpec((1, H, 1, hd), w4_map),       # bv
        pl.BlockSpec((1, H, hd, E), w4_map),       # wo (per-head)
        pl.BlockSpec((1, 1, E), w3_map),           # bo
        pl.BlockSpec((1, 1, E), w3_map),           # g1
        pl.BlockSpec((1, 1, E), w3_map),           # be1
        pl.BlockSpec((1, E, F), w3_map),           # w1
        pl.BlockSpec((1, 1, F), w3_map),           # b1
        pl.BlockSpec((1, F, E), w3_map),           # w2
        pl.BlockSpec((1, 1, E), w3_map),           # b2
        pl.BlockSpec((1, 1, E), w3_map),           # g2
        pl.BlockSpec((1, 1, E), w3_map),           # be2
        pl.BlockSpec((1, E), const_map),           # final-norm gamma
        pl.BlockSpec((1, E), const_map),           # final-norm beta
    ]

    out = pl.pallas_call(
        partial(_fused_encoder_kernel, H, hd, bool(cfg["norm"])),
        out_shape=jax.ShapeDtypeStruct((B, 1, E), jnp.float32),
        grid=(B, L),                                           # batch outer, layers inner
        in_specs=in_specs,
        out_specs=pl.BlockSpec((1, 1, E), act_map),
        scratch_shapes=[pltpu.VMEM((S, E), jnp.float32)],      # resident activations
        compiler_params=pltpu.CompilerParams(
            dimension_semantics=("parallel", "arbitrary")),
    )(x, mask3, *weights)
    return out[:, 0, :]                                        # (B, E) == X[-1, ...]


# ----------------------------------------------------------------------------
# Deterministic synthetic params (shapes match nn.TransformerEncoderLayer,
# stored stacked per layer and pre-sharded per head for the fused kernel).
# ----------------------------------------------------------------------------
def init_params(key, cfg):
    V, E = cfg["vocab_size"], cfg["emb_size"]
    F, L, H = cfg["dim_feedforward"], cfg["num_layers"], cfg["nhead"]
    hd = E // H
    k = jax.random.split(key, 7)
    sa = 1.0 / math.sqrt(E)
    sf = 1.0 / math.sqrt(F)

    def u(kk, shape, s):
        return jax.random.uniform(kk, shape, jnp.float32, -s, s)

    emb = jax.random.normal(k[0], (V, E), jnp.float32)          # nn.Embedding ~ N(0, 1)

    # (in, out) layout, then per-head re-layout: (L, E, E) -> (L, H, E, hd)
    wq = u(k[1], (L, E, E), sa).reshape(L, E, H, hd).transpose(0, 2, 1, 3)
    wk = u(k[2], (L, E, E), sa).reshape(L, E, H, hd).transpose(0, 2, 1, 3)
    wv = u(k[3], (L, E, E), sa).reshape(L, E, H, hd).transpose(0, 2, 1, 3)
    wo = u(k[4], (L, E, E), sa).reshape(L, H, hd, E)            # rows grouped per head
    w1 = u(k[5], (L, E, F), sa)
    w2 = u(k[6], (L, F, E), sf)

    return dict(
        embedding=emb,
        wq=wq.astype(jnp.bfloat16), wk=wk.astype(jnp.bfloat16),
        wv=wv.astype(jnp.bfloat16), wo=wo.astype(jnp.bfloat16),
        w1=w1.astype(jnp.bfloat16), w2=w2.astype(jnp.bfloat16),
        bq=jnp.zeros((L, H, 1, hd), jnp.float32),
        bk=jnp.zeros((L, H, 1, hd), jnp.float32),
        bv=jnp.zeros((L, H, 1, hd), jnp.float32),
        bo=jnp.zeros((L, 1, E), jnp.float32),
        g1=jnp.ones((L, 1, E), jnp.float32),
        be1=jnp.zeros((L, 1, E), jnp.float32),
        b1=jnp.zeros((L, 1, F), jnp.float32),
        b2=jnp.zeros((L, 1, E), jnp.float32),
        g2=jnp.ones((L, 1, E), jnp.float32),
        be2=jnp.zeros((L, 1, E), jnp.float32),
        gf=jnp.ones((1, E), jnp.float32),           # final LayerNorm (used iff norm=True)
        bf=jnp.zeros((1, E), jnp.float32),
    )


# ----------------------------------------------------------------------------
if __name__ == "__main__":
    # TODO(synk): dropout is identity (eval-mode); training-mode dropout not implemented.
    cfg = dict(vocab_size=50, emb_size=32, num_layers=2, nhead=4,
               dim_feedforward=64, dropout=0.0, norm=True)
    key = jax.random.PRNGKey(0)
    pkey, tkey = jax.random.split(key)
    params = init_params(pkey, cfg)

    S, B = 8, 2
    tokens = jax.random.randint(tkey, (S, B), 0, cfg["vocab_size"], jnp.int32)  # (seq, batch)
    pad_mask = jnp.zeros((B, S), jnp.bool_).at[1, 6:].set(True)                 # True = pad

    out = jax.block_until_ready(seq_encoder_forward(tokens, pad_mask, params, cfg))
    assert out.shape == (B, cfg["emb_size"]) and out.dtype == jnp.float32
    assert bool(jnp.all(jnp.isfinite(out)))
    print("KERNEL_OK")
</pallas_src>

<mosaic_0001>
module attributes {stable_mosaic.version = 11 : i64} {
  func.func @_fused_encoder_kernel(%arg0: i32, %arg1: i32, %arg2: memref<1x8x32xf32, #tpu.memory_space<vmem>>, %arg3: memref<1x1x8xf32, #tpu.memory_space<vmem>>, %arg4: memref<1x4x32x8xbf16, #tpu.memory_space<vmem>>, %arg5: memref<1x4x32x8xbf16, #tpu.memory_space<vmem>>, %arg6: memref<1x4x32x8xbf16, #tpu.memory_space<vmem>>, %arg7: memref<1x4x1x8xf32, #tpu.memory_space<vmem>>, %arg8: memref<1x4x1x8xf32, #tpu.memory_space<vmem>>, %arg9: memref<1x4x1x8xf32, #tpu.memory_space<vmem>>, %arg10: memref<1x4x8x32xbf16, #tpu.memory_space<vmem>>, %arg11: memref<1x1x32xf32, #tpu.memory_space<vmem>>, %arg12: memref<1x1x32xf32, #tpu.memory_space<vmem>>, %arg13: memref<1x1x32xf32, #tpu.memory_space<vmem>>, %arg14: memref<1x32x64xbf16, #tpu.memory_space<vmem>>, %arg15: memref<1x1x64xf32, #tpu.memory_space<vmem>>, %arg16: memref<1x64x32xbf16, #tpu.memory_space<vmem>>, %arg17: memref<1x1x32xf32, #tpu.memory_space<vmem>>, %arg18: memref<1x1x32xf32, #tpu.memory_space<vmem>>, %arg19: memref<1x1x32xf32, #tpu.memory_space<vmem>>, %arg20: memref<1x32xf32, #tpu.memory_space<vmem>>, %arg21: memref<1x32xf32, #tpu.memory_space<vmem>>, %arg22: memref<1x1x32xf32, #tpu.memory_space<vmem>>, %arg23: memref<8x32xf32, #tpu.memory_space<vmem>>) attributes {dimension_semantics = [#tpu.dimension_semantics<parallel>, #tpu.dimension_semantics<arbitrary>], iteration_bounds = array<i64: 2, 2>, scalar_prefetch = 0 : i64, scratch_operands = 1 : i64, tpu.core_type = #tpu.core_type<tc>, window_params = [{transform_indices = @transform_0, window_bounds = array<i64: 1, 8, 32>}, {transform_indices = @transform_1, window_bounds = array<i64: 1, 1, 8>}, {transform_indices = @transform_2, window_bounds = array<i64: 1, 4, 32, 8>}, {transform_indices = @transform_3, window_bounds = array<i64: 1, 4, 32, 8>}, {transform_indices = @transform_4, window_bounds = array<i64: 1, 4, 32, 8>}, {transform_indices = @transform_5, window_bounds = array<i64: 1, 4, 1, 8>}, {transform_indices = @transform_6, window_bounds = array<i64: 1, 4, 1, 8>}, {transform_indices = @transform_7, window_bounds = array<i64: 1, 4, 1, 8>}, {transform_indices = @transform_8, window_bounds = array<i64: 1, 4, 8, 32>}, {transform_indices = @transform_9, window_bounds = array<i64: 1, 1, 32>}, {transform_indices = @transform_10, window_bounds = array<i64: 1, 1, 32>}, {transform_indices = @transform_11, window_bounds = array<i64: 1, 1, 32>}, {transform_indices = @transform_12, window_bounds = array<i64: 1, 32, 64>}, {transform_indices = @transform_13, window_bounds = array<i64: 1, 1, 64>}, {transform_indices = @transform_14, window_bounds = array<i64: 1, 64, 32>}, {transform_indices = @transform_15, window_bounds = array<i64: 1, 1, 32>}, {transform_indices = @transform_16, window_bounds = array<i64: 1, 1, 32>}, {transform_indices = @transform_17, window_bounds = array<i64: 1, 1, 32>}, {pipeline_mode = #tpu.pipeline_mode<synchronous>, transform_indices = @transform_18, window_bounds = array<i64: 1, 32>}, {pipeline_mode = #tpu.pipeline_mode<synchronous>, transform_indices = @transform_19, window_bounds = array<i64: 1, 32>}, {transform_indices = @transform_20, window_bounds = array<i64: 1, 1, 32>}]} {
    %c0_i32 = arith.constant 0 : i32
    %0 = arith.cmpi eq, %arg1, %c0_i32 : i32
    %1 = arith.extui %0 : i1 to i32
    %c0_i32_0 = arith.constant 0 : i32
    %2 = arith.cmpi ne, %1, %c0_i32_0 : i32
    scf.if %2 {
      %c0_87 = arith.constant 0 : index
      %c0_88 = arith.constant 0 : index
      %c0_89 = arith.constant 0 : index
      %139 = vector.load %arg2[%c0_87, %c0_88, %c0_89] : memref<1x8x32xf32, #tpu.memory_space<vmem>>, vector<1x8x32xf32>
      %140 = vector.shape_cast %139 : vector<1x8x32xf32> to vector<8x32xf32>
      %c0_90 = arith.constant 0 : index
      %c0_91 = arith.constant 0 : index
      %141 = vector.load %arg23[%c0_90, %c0_91] : memref<8x32xf32, #tpu.memory_space<vmem>>, vector<8x32xf32>
      tpu.vector_store %arg23[%c0_90, %c0_91], %140 {strides = array<i32>} : memref<8x32xf32, #tpu.memory_space<vmem>>, vector<8x32xf32>,
    } else {
    }
    %c0 = arith.constant 0 : index
    %c0_1 = arith.constant 0 : index
    %3 = vector.load %arg23[%c0, %c0_1] : memref<8x32xf32, #tpu.memory_space<vmem>>, vector<8x32xf32>
    %c0_2 = arith.constant 0 : index
    %c0_3 = arith.constant 0 : index
    %c0_4 = arith.constant 0 : index
    %4 = vector.load %arg3[%c0_2, %c0_3, %c0_4] : memref<1x1x8xf32, #tpu.memory_space<vmem>>, vector<1x1x8xf32>
    %5 = vector.shape_cast %4 : vector<1x1x8xf32> to vector<1x8xf32>
    %cst = arith.constant -1.000000e+30 : f32
    %6 = vector.broadcast %cst : f32 to vector<1x8xf32>
    %7 = arith.mulf %5, %6 : vector<1x8xf32>
    %8 = vector.shape_cast %7 : vector<1x8xf32> to vector<1x1x8xf32>
    %9 = arith.truncf %3 : vector<8x32xf32> to vector<8x32xbf16>
    %10 = vector.shape_cast %9 : vector<8x32xbf16> to vector<1x8x32xbf16>
    %11 = vector.shape_cast %10 : vector<1x8x32xbf16> to vector<1x8x32xbf16>
    %12 = vector.broadcast %11 : vector<1x8x32xbf16> to vector<4x8x32xbf16>
    %c0_5 = arith.constant 0 : index
    %c0_6 = arith.constant 0 : index
    %c0_7 = arith.constant 0 : index
    %c0_8 = arith.constant 0 : index
    %13 = vector.load %arg4[%c0_5, %c0_6, %c0_7, %c0_8] : memref<1x4x32x8xbf16, #tpu.memory_space<vmem>>, vector<1x4x32x8xbf16>
    %14 = vector.shape_cast %13 : vector<1x4x32x8xbf16> to vector<4x32x8xbf16>
    "tpu.trace_start"() <{level = 10 : i32, message = "hse,hed->hsd"}> : () -> ()
    %cst_9 = arith.constant dense<0.000000e+00> : vector<4x8x8xf32>
    %15 = tpu.matmul %12, %14, %cst_9 {dimension_numbers = #tpu.dot_dimension_numbers<[2], [1], [1], [2], [0, 0, 0, 1, 1, 2], [0], [0]>} : vector<4x8x32xbf16>, vector<4x32x8xbf16>, vector<4x8x8xf32> -> vector<4x8x8xf32>
    "tpu.trace_stop"() : () -> ()
    %c0_10 = arith.constant 0 : index
    %c0_11 = arith.constant 0 : index
    %c0_12 = arith.constant 0 : index
    %c0_13 = arith.constant 0 : index
    %16 = vector.load %arg7[%c0_10, %c0_11, %c0_12, %c0_13] : memref<1x4x1x8xf32, #tpu.memory_space<vmem>>, vector<1x4x1x8xf32>
    %17 = vector.shape_cast %16 : vector<1x4x1x8xf32> to vector<4x1x8xf32>
    %18 = vector.broadcast %17 : vector<4x1x8xf32> to vector<4x8x8xf32>
    %19 = arith.addf %15, %18 : vector<4x8x8xf32>
    %c0_14 = arith.constant 0 : index
    %c0_15 = arith.constant 0 : index
    %c0_16 = arith.constant 0 : index
    %c0_17 = arith.constant 0 : index
    %20 = vector.load %arg5[%c0_14, %c0_15, %c0_16, %c0_17] : memref<1x4x32x8xbf16, #tpu.memory_space<vmem>>, vector<1x4x32x8xbf16>
    %21 = vector.shape_cast %20 : vector<1x4x32x8xbf16> to vector<4x32x8xbf16>
    "tpu.trace_start"() <{level = 10 : i32, message = "hse,hed->hsd"}> : () -> ()
    %cst_18 = arith.constant dense<0.000000e+00> : vector<4x8x8xf32>
    %22 = tpu.matmul %12, %21, %cst_18 {dimension_numbers = #tpu.dot_dimension_numbers<[2], [1], [1], [2], [0, 0, 0, 1, 1, 2], [0], [0]>} : vector<4x8x32xbf16>, vector<4x32x8xbf16>, vector<4x8x8xf32> -> vector<4x8x8xf32>
    "tpu.trace_stop"() : () -> ()
    %c0_19 = arith.constant 0 : index
    %c0_20 = arith.constant 0 : index
    %c0_21 = arith.constant 0 : index
    %c0_22 = arith.constant 0 : index
    %23 = vector.load %arg8[%c0_19, %c0_20, %c0_21, %c0_22] : memref<1x4x1x8xf32, #tpu.memory_space<vmem>>, vector<1x4x1x8xf32>
    %24 = vector.shape_cast %23 : vector<1x4x1x8xf32> to vector<4x1x8xf32>
    %25 = vector.broadcast %24 : vector<4x1x8xf32> to vector<4x8x8xf32>
    %26 = arith.addf %22, %25 : vector<4x8x8xf32>
    %c0_23 = arith.constant 0 : index
    %c0_24 = arith.constant 0 : index
    %c0_25 = arith.constant 0 : index
    %c0_26 = arith.constant 0 : index
    %27 = vector.load %arg6[%c0_23, %c0_24, %c0_25, %c0_26] : memref<1x4x32x8xbf16, #tpu.memory_space<vmem>>, vector<1x4x32x8xbf16>
    %28 = vector.shape_cast %27 : vector<1x4x32x8xbf16> to vector<4x32x8xbf16>
    "tpu.trace_start"() <{level = 10 : i32, message = "hse,hed->hsd"}> : () -> ()
    %cst_27 = arith.constant dense<0.000000e+00> : vector<4x8x8xf32>
    %29 = tpu.matmul %12, %28, %cst_27 {dimension_numbers = #tpu.dot_dimension_numbers<[2], [1], [1], [2], [0, 0, 0, 1, 1, 2], [0], [0]>} : vector<4x8x32xbf16>, vector<4x32x8xbf16>, vector<4x8x8xf32> -> vector<4x8x8xf32>
    "tpu.trace_stop"() : () -> ()
    %c0_28 = arith.constant 0 : index
    %c0_29 = arith.constant 0 : index
    %c0_30 = arith.constant 0 : index
    %c0_31 = arith.constant 0 : index
    %30 = vector.load %arg9[%c0_28, %c0_29, %c0_30, %c0_31] : memref<1x4x1x8xf32, #tpu.memory_space<vmem>>, vector<1x4x1x8xf32>
    %31 = vector.shape_cast %30 : vector<1x4x1x8xf32> to vector<4x1x8xf32>
    %32 = vector.broadcast %31 : vector<4x1x8xf32> to vector<4x8x8xf32>
    %33 = arith.addf %29, %32 : vector<4x8x8xf32>
    %34 = arith.truncf %19 : vector<4x8x8xf32> to vector<4x8x8xbf16>
    %35 = arith.truncf %26 : vector<4x8x8xf32> to vector<4x8x8xbf16>
    "tpu.trace_start"() <{level = 10 : i32, message = "hqd,hkd->hqk"}> : () -> ()
    %cst_32 = arith.constant dense<0.000000e+00> : vector<4x8x8xf32>
    %36 = tpu.matmul %34, %35, %cst_32 {dimension_numbers = #tpu.dot_dimension_numbers<[2], [2], [1], [1], [0, 0, 0, 1, 1, 1], [0], [0]>} : vector<4x8x8xbf16>, vector<4x8x8xbf16>, vector<4x8x8xf32> -> vector<4x8x8xf32>
    "tpu.trace_stop"() : () -> ()
    %cst_33 = arith.constant 0.353553385 : f32
    %37 = vector.broadcast %cst_33 : f32 to vector<4x8x8xf32>
    %38 = arith.mulf %36, %37 : vector<4x8x8xf32>
    %39 = vector.broadcast %8 : vector<1x1x8xf32> to vector<4x8x8xf32>
    %40 = arith.addf %38, %39 : vector<4x8x8xf32>
    %cst_34 = arith.constant dense<0xFF800000> : vector<4x8xf32>
    %41 = vector.multi_reduction <maximumf>, %40, %cst_34 [2] : vector<4x8x8xf32> to vector<4x8xf32>
    %42 = vector.shape_cast %41 : vector<4x8xf32> to vector<4x8x1xf32>
    %43 = vector.broadcast %42 : vector<4x8x1xf32> to vector<4x8x8xf32>
    %44 = arith.subf %40, %43 : vector<4x8x8xf32>
    %45 = math.exp %44 : vector<4x8x8xf32>
    %cst_35 = arith.constant dense<0.000000e+00> : vector<4x8xf32>
    %46 = vector.multi_reduction <add>, %45, %cst_35 [2] : vector<4x8x8xf32> to vector<4x8xf32>
    %47 = vector.shape_cast %46 : vector<4x8xf32> to vector<4x8x1xf32>
    %48 = tpu.reciprocal %47 {approx = true} : vector<4x8x1xf32> -> vector<4x8x1xf32>
    %49 = vector.broadcast %48 : vector<4x8x1xf32> to vector<4x8x8xf32>
    %50 = arith.mulf %45, %49 : vector<4x8x8xf32>
    %51 = arith.truncf %50 : vector<4x8x8xf32> to vector<4x8x8xbf16>
    %52 = arith.truncf %33 : vector<4x8x8xf32> to vector<4x8x8xbf16>
    "tpu.trace_start"() <{level = 10 : i32, message = "hqk,hkd->hqd"}> : () -> ()
    %cst_36 = arith.constant dense<0.000000e+00> : vector<4x8x8xf32>
    %53 = tpu.matmul %51, %52, %cst_36 {dimension_numbers = #tpu.dot_dimension_numbers<[2], [1], [1], [2], [0, 0, 0, 1, 1, 2], [0], [0]>} : vector<4x8x8xbf16>, vector<4x8x8xbf16>, vector<4x8x8xf32> -> vector<4x8x8xf32>
    "tpu.trace_stop"() : () -> ()
    %54 = arith.truncf %53 : vector<4x8x8xf32> to vector<4x8x8xbf16>
    %c0_37 = arith.constant 0 : index
    %c0_38 = arith.constant 0 : index
    %c0_39 = arith.constant 0 : index
    %c0_40 = arith.constant 0 : index
    %55 = vector.load %arg10[%c0_37, %c0_38, %c0_39, %c0_40] : memref<1x4x8x32xbf16, #tpu.memory_space<vmem>>, vector<1x4x8x32xbf16>
    %56 = vector.shape_cast %55 : vector<1x4x8x32xbf16> to vector<4x8x32xbf16>
    "tpu.trace_start"() <{level = 10 : i32, message = "hqd,hde->hqe"}> : () -> ()
    %cst_41 = arith.constant dense<0.000000e+00> : vector<4x8x32xf32>
    %57 = tpu.matmul %54, %56, %cst_41 {dimension_numbers = #tpu.dot_dimension_numbers<[2], [1], [1], [2], [0, 0, 0, 1, 1, 2], [0], [0]>} : vector<4x8x8xbf16>, vector<4x8x32xbf16>, vector<4x8x32xf32> -> vector<4x8x32xf32>
    "tpu.trace_stop"() : () -> ()
    %cst_42 = arith.constant dense<0.000000e+00> : vector<8x32xf32>
    %58 = vector.multi_reduction <add>, %57, %cst_42 [0] : vector<4x8x32xf32> to vector<8x32xf32>
    %c0_43 = arith.constant 0 : index
    %c0_44 = arith.constant 0 : index
    %c0_45 = arith.constant 0 : index
    %59 = vector.load %arg11[%c0_43, %c0_44, %c0_45] : memref<1x1x32xf32, #tpu.memory_space<vmem>>, vector<1x1x32xf32>
    %60 = vector.shape_cast %59 : vector<1x1x32xf32> to vector<1x32xf32>
    %61 = vector.broadcast %60 : vector<1x32xf32> to vector<8x32xf32>
    %62 = arith.addf %58, %61 : vector<8x32xf32>
    %63 = arith.addf %3, %62 : vector<8x32xf32>
    %cst_46 = arith.constant dense<0.000000e+00> : vector<8xf32>
    %64 = vector.multi_reduction <add>, %63, %cst_46 [1] : vector<8x32xf32> to vector<8xf32>
    %65 = vector.shape_cast %64 : vector<8xf32> to vector<8x1xf32>
    %cst_47 = arith.constant 3.200000e+01 : f32
    %66 = vector.broadcast %cst_47 : f32 to vector<8x1xf32>
    %67 = arith.divf %65, %66 : vector<8x1xf32>
    %68 = vector.broadcast %67 : vector<8x1xf32> to vector<8x32xf32>
    %69 = arith.subf %63, %68 : vector<8x32xf32>
    %70 = arith.mulf %69, %69 : vector<8x32xf32>
    %cst_48 = arith.constant dense<0.000000e+00> : vector<8xf32>
    %71 = vector.multi_reduction <add>, %70, %cst_48 [1] : vector<8x32xf32> to vector<8xf32>
    %72 = vector.shape_cast %71 : vector<8xf32> to vector<8x1xf32>
    %cst_49 = arith.constant 3.200000e+01 : f32
    %73 = vector.broadcast %cst_49 : f32 to vector<8x1xf32>
    %74 = arith.divf %72, %73 : vector<8x1xf32>
    %75 = vector.broadcast %67 : vector<8x1xf32> to vector<8x32xf32>
    %76 = arith.subf %63, %75 : vector<8x32xf32>
    %cst_50 = arith.constant 9.99999974E-6 : f32
    %77 = vector.broadcast %cst_50 : f32 to vector<8x1xf32>
    %78 = arith.addf %74, %77 : vector<8x1xf32>
    %79 = math.rsqrt %78 : vector<8x1xf32>
    %80 = vector.broadcast %79 : vector<8x1xf32> to vector<8x32xf32>
    %81 = arith.mulf %76, %80 : vector<8x32xf32>
    %c0_51 = arith.constant 0 : index
    %c0_52 = arith.constant 0 : index
    %c0_53 = arith.constant 0 : index
    %82 = vector.load %arg12[%c0_51, %c0_52, %c0_53] : memref<1x1x32xf32, #tpu.memory_space<vmem>>, vector<1x1x32xf32>
    %83 = vector.shape_cast %82 : vector<1x1x32xf32> to vector<1x32xf32>
    %84 = vector.broadcast %83 : vector<1x32xf32> to vector<8x32xf32>
    %85 = arith.mulf %81, %84 : vector<8x32xf32>
    %c0_54 = arith.constant 0 : index
    %c0_55 = arith.constant 0 : index
    %c0_56 = arith.constant 0 : index
    %86 = vector.load %arg13[%c0_54, %c0_55, %c0_56] : memref<1x1x32xf32, #tpu.memory_space<vmem>>, vector<1x1x32xf32>
    %87 = vector.shape_cast %86 : vector<1x1x32xf32> to vector<1x32xf32>
    %88 = vector.broadcast %87 : vector<1x32xf32> to vector<8x32xf32>
    %89 = arith.addf %85, %88 : vector<8x32xf32>
    %90 = arith.truncf %89 : vector<8x32xf32> to vector<8x32xbf16>
    %c0_57 = arith.constant 0 : index
    %c0_58 = arith.constant 0 : index
    %c0_59 = arith.constant 0 : index
    %91 = vector.load %arg14[%c0_57, %c0_58, %c0_59] : memref<1x32x64xbf16, #tpu.memory_space<vmem>>, vector<1x32x64xbf16>
    %92 = vector.shape_cast %91 : vector<1x32x64xbf16> to vector<32x64xbf16>
    %cst_60 = arith.constant dense<0.000000e+00> : vector<8x64xf32>
    %93 = tpu.matmul %90, %92, %cst_60 {dimension_numbers = #tpu.dot_dimension_numbers<[1], [0], [0], [1], [0, 0, 1, 1], [], []>} : vector<8x32xbf16>, vector<32x64xbf16>, vector<8x64xf32> -> vector<8x64xf32>
    %c0_61 = arith.constant 0 : index
    %c0_62 = arith.constant 0 : index
    %c0_63 = arith.constant 0 : index
    %94 = vector.load %arg15[%c0_61, %c0_62, %c0_63] : memref<1x1x64xf32, #tpu.memory_space<vmem>>, vector<1x1x64xf32>
    %95 = vector.shape_cast %94 : vector<1x1x64xf32> to vector<1x64xf32>
    %96 = vector.broadcast %95 : vector<1x64xf32> to vector<8x64xf32>
    %97 = arith.addf %93, %96 : vector<8x64xf32>
    %cst_64 = arith.constant 0.000000e+00 : f32
    %98 = vector.broadcast %cst_64 : f32 to vector<8x64xf32>
    %99 = arith.maximumf %97, %98 : vector<8x64xf32>
    %100 = arith.truncf %99 : vector<8x64xf32> to vector<8x64xbf16>
    %c0_65 = arith.constant 0 : index
    %c0_66 = arith.constant 0 : index
    %c0_67 = arith.constant 0 : index
    %101 = vector.load %arg16[%c0_65, %c0_66, %c0_67] : memref<1x64x32xbf16, #tpu.memory_space<vmem>>, vector<1x64x32xbf16>
    %102 = vector.shape_cast %101 : vector<1x64x32xbf16> to vector<64x32xbf16>
    %cst_68 = arith.constant dense<0.000000e+00> : vector<8x32xf32>
    %103 = tpu.matmul %100, %102, %cst_68 {dimension_numbers = #tpu.dot_dimension_numbers<[1], [0], [0], [1], [0, 0, 1, 1], [], []>} : vector<8x64xbf16>, vector<64x32xbf16>, vector<8x32xf32> -> vector<8x32xf32>
    %c0_69 = arith.constant 0 : index
    %c0_70 = arith.constant 0 : index
    %c0_71 = arith.constant 0 : index
    %104 = vector.load %arg17[%c0_69, %c0_70, %c0_71] : memref<1x1x32xf32, #tpu.memory_space<vmem>>, vector<1x1x32xf32>
    %105 = vector.shape_cast %104 : vector<1x1x32xf32> to vector<1x32xf32>
    %106 = vector.broadcast %105 : vector<1x32xf32> to vector<8x32xf32>
    %107 = arith.addf %103, %106 : vector<8x32xf32>
    %108 = arith.addf %89, %107 : vector<8x32xf32>
    %cst_72 = arith.constant dense<0.000000e+00> : vector<8xf32>
    %109 = vector.multi_reduction <add>, %108, %cst_72 [1] : vector<8x32xf32> to vector<8xf32>
    %110 = vector.shape_cast %109 : vector<8xf32> to vector<8x1xf32>
    %cst_73 = arith.constant 3.200000e+01 : f32
    %111 = vector.broadcast %cst_73 : f32 to vector<8x1xf32>
    %112 = arith.divf %110, %111 : vector<8x1xf32>
    %113 = vector.broadcast %112 : vector<8x1xf32> to vector<8x32xf32>
    %114 = arith.subf %108, %113 : vector<8x32xf32>
    %115 = arith.mulf %114, %114 : vector<8x32xf32>
    %cst_74 = arith.constant dense<0.000000e+00> : vector<8xf32>
    %116 = vector.multi_reduction <add>, %115, %cst_74 [1] : vector<8x32xf32> to vector<8xf32>
    %117 = vector.shape_cast %116 : vector<8xf32> to vector<8x1xf32>
    %cst_75 = arith.constant 3.200000e+01 : f32
    %118 = vector.broadcast %cst_75 : f32 to vector<8x1xf32>
    %119 = arith.divf %117, %118 : vector<8x1xf32>
    %120 = vector.broadcast %112 : vector<8x1xf32> to vector<8x32xf32>
    %121 = arith.subf %108, %120 : vector<8x32xf32>
    %cst_76 = arith.constant 9.99999974E-6 : f32
    %122 = vector.broadcast %cst_76 : f32 to vector<8x1xf32>
    %123 = arith.addf %119, %122 : vector<8x1xf32>
    %124 = math.rsqrt %123 : vector<8x1xf32>
    %125 = vector.broadcast %124 : vector<8x1xf32> to vector<8x32xf32>
    %126 = arith.mulf %121, %125 : vector<8x32xf32>
    %c0_77 = arith.constant 0 : index
    %c0_78 = arith.constant 0 : index
    %c0_79 = arith.constant 0 : index
    %127 = vector.load %arg18[%c0_77, %c0_78, %c0_79] : memref<1x1x32xf32, #tpu.memory_space<vmem>>, vector<1x1x32xf32>
    %128 = vector.shape_cast %127 : vector<1x1x32xf32> to vector<1x32xf32>
    %129 = vector.broadcast %128 : vector<1x32xf32> to vector<8x32xf32>
    %130 = arith.mulf %126, %129 : vector<8x32xf32>
    %c0_80 = arith.constant 0 : index
    %c0_81 = arith.constant 0 : index
    %c0_82 = arith.constant 0 : index
    %131 = vector.load %arg19[%c0_80, %c0_81, %c0_82] : memref<1x1x32xf32, #tpu.memory_space<vmem>>, vector<1x1x32xf32>
    %132 = vector.shape_cast %131 : vector<1x1x32xf32> to vector<1x32xf32>
    %133 = vector.broadcast %132 : vector<1x32xf32> to vector<8x32xf32>
    %134 = arith.addf %130, %133 : vector<8x32xf32>
    %c0_83 = arith.constant 0 : index
    %c0_84 = arith.constant 0 : index
    %135 = vector.load %arg23[%c0_83, %c0_84] : memref<8x32xf32, #tpu.memory_space<vmem>>, vector<8x32xf32>
    tpu.vector_store %arg23[%c0_83, %c0_84], %134 {strides = array<i32>} : memref<8x32xf32, #tpu.memory_space<vmem>>, vector<8x32xf32>,
    %c1_i32 = arith.constant 1 : i32
    %136 = arith.cmpi eq, %arg1, %c1_i32 : i32
    %137 = arith.extui %136 : i1 to i32
    %cst_85 = arith.constant 9.99999974E-6 : f32
    %c0_i32_86 = arith.constant 0 : i32
    %138 = arith.cmpi ne, %137, %c0_i32_86 : i32
    scf.if %138 {
      %139 = vector.extract_strided_slice %134 {offsets = [7, 0], sizes = [1, 32], strides = [1, 1]} : vector<8x32xf32> to vector<1x32xf32>
      %cst_87 = arith.constant dense<0.000000e+00> : vector<1xf32>
      %140 = vector.multi_reduction <add>, %139, %cst_87 [1] : vector<1x32xf32> to vector<1xf32>
      %141 = vector.shape_cast %140 : vector<1xf32> to vector<1x1xf32>
      %cst_88 = arith.constant 3.200000e+01 : f32
      %142 = vector.broadcast %cst_88 : f32 to vector<1x1xf32>
      %143 = arith.divf %141, %142 : vector<1x1xf32>
      %144 = vector.broadcast %143 : vector<1x1xf32> to vector<1x32xf32>
      %145 = arith.subf %139, %144 : vector<1x32xf32>
      %146 = arith.mulf %145, %145 : vector<1x32xf32>
      %cst_89 = arith.constant dense<0.000000e+00> : vector<1xf32>
      %147 = vector.multi_reduction <add>, %146, %cst_89 [1] : vector<1x32xf32> to vector<1xf32>
      %148 = vector.shape_cast %147 : vector<1xf32> to vector<1x1xf32>
      %cst_90 = arith.constant 3.200000e+01 : f32
      %149 = vector.broadcast %cst_90 : f32 to vector<1x1xf32>
      %150 = arith.divf %148, %149 : vector<1x1xf32>
      %151 = vector.broadcast %143 : vector<1x1xf32> to vector<1x32xf32>
      %152 = arith.subf %139, %151 : vector<1x32xf32>
      %153 = vector.broadcast %cst_85 : f32 to vector<1x1xf32>
      %154 = arith.addf %150, %153 : vector<1x1xf32>
      %155 = math.rsqrt %154 : vector<1x1xf32>
      %156 = vector.broadcast %155 : vector<1x1xf32> to vector<1x32xf32>
      %157 = arith.mulf %152, %156 : vector<1x32xf32>
      %c0_91 = arith.constant 0 : index
      %c0_92 = arith.constant 0 : index
      %158 = vector.load %arg20[%c0_91, %c0_92] : memref<1x32xf32, #tpu.memory_space<vmem>>, vector<1x32xf32>
      %159 = arith.mulf %157, %158 : vector<1x32xf32>
      %c0_93 = arith.constant 0 : index
      %c0_94 = arith.constant 0 : index
      %160 = vector.load %arg21[%c0_93, %c0_94] : memref<1x32xf32, #tpu.memory_space<vmem>>, vector<1x32xf32>
      %161 = arith.addf %159, %160 : vector<1x32xf32>
      %c0_95 = arith.constant 0 : index
      %c0_96 = arith.constant 0 : index
      %c0_97 = arith.constant 0 : index
      %162 = vector.load %arg22[%c0_95, %c0_96, %c0_97] : memref<1x1x32xf32, #tpu.memory_space<vmem>>, vector<1x1x32xf32>
      %163 = vector.shape_cast %162 : vector<1x1x32xf32> to vector<1x32xf32>
      %164 = vector.shape_cast %161 : vector<1x32xf32> to vector<1x1x32xf32>
      tpu.vector_store %arg22[%c0_95, %c0_96, %c0_97], %164 {strides = array<i32>} : memref<1x1x32xf32, #tpu.memory_space<vmem>>, vector<1x1x32xf32>,
    } else {
    }
    return
  }
  func.func @transform_0(%arg0: i32, %arg1: i32) -> (i32, i32, i32) {
    %c0_i32 = arith.constant 0 : i32
    %c0_i32_0 = arith.constant 0 : i32
    %c0_i32_1 = arith.constant 0 : i32
    return %arg0, %c0_i32, %c0_i32_0 : i32, i32, i32
  }
  func.func @transform_1(%arg0: i32, %arg1: i32) -> (i32, i32, i32) {
    %c0_i32 = arith.constant 0 : i32
    %c0_i32_0 = arith.constant 0 : i32
    %c0_i32_1 = arith.constant 0 : i32
    return %arg0, %c0_i32, %c0_i32_0 : i32, i32, i32
  }
  func.func @transform_2(%arg0: i32, %arg1: i32) -> (i32, i32, i32, i32) {
    %c0_i32 = arith.constant 0 : i32
    %c0_i32_0 = arith.constant 0 : i32
    %c0_i32_1 = arith.constant 0 : i32
    %c0_i32_2 = arith.constant 0 : i32
    return %arg1, %c0_i32, %c0_i32_0, %c0_i32_1 : i32, i32, i32, i32
  }
  func.func @transform_3(%arg0: i32, %arg1: i32) -> (i32, i32, i32, i32) {
    %c0_i32 = arith.constant 0 : i32
    %c0_i32_0 = arith.constant 0 : i32
    %c0_i32_1 = arith.constant 0 : i32
    %c0_i32_2 = arith.constant 0 : i32
    return %arg1, %c0_i32, %c0_i32_0, %c0_i32_1 : i32, i32, i32, i32
  }
  func.func @transform_4(%arg0: i32, %arg1: i32) -> (i32, i32, i32, i32) {
    %c0_i32 = arith.constant 0 : i32
    %c0_i32_0 = arith.constant 0 : i32
    %c0_i32_1 = arith.constant 0 : i32
    %c0_i32_2 = arith.constant 0 : i32
    return %arg1, %c0_i32, %c0_i32_0, %c0_i32_1 : i32, i32, i32, i32
  }
  func.func @transform_5(%arg0: i32, %arg1: i32) -> (i32, i32, i32, i32) {
    %c0_i32 = arith.constant 0 : i32
    %c0_i32_0 = arith.constant 0 : i32
    %c0_i32_1 = arith.constant 0 : i32
    %c0_i32_2 = arith.constant 0 : i32
    return %arg1, %c0_i32, %c0_i32_0, %c0_i32_1 : i32, i32, i32, i32
  }
  func.func @transform_6(%arg0: i32, %arg1: i32) -> (i32, i32, i32, i32) {
    %c0_i32 = arith.constant 0 : i32
    %c0_i32_0 = arith.constant 0 : i32
    %c0_i32_1 = arith.constant 0 : i32
    %c0_i32_2 = arith.constant 0 : i32
    return %arg1, %c0_i32, %c0_i32_0, %c0_i32_1 : i32, i32, i32, i32
  }
  func.func @transform_7(%arg0: i32, %arg1: i32) -> (i32, i32, i32, i32) {
    %c0_i32 = arith.constant 0 : i32
    %c0_i32_0 = arith.constant 0 : i32
    %c0_i32_1 = arith.constant 0 : i32
    %c0_i32_2 = arith.constant 0 : i32
    return %arg1, %c0_i32, %c0_i32_0, %c0_i32_1 : i32, i32, i32, i32
  }
  func.func @transform_8(%arg0: i32, %arg1: i32) -> (i32, i32, i32, i32) {
    %c0_i32 = arith.constant 0 : i32
    %c0_i32_0 = arith.constant 0 : i32
    %c0_i32_1 = arith.constant 0 : i32
    %c0_i32_2 = arith.constant 0 : i32
    return %arg1, %c0_i32, %c0_i32_0, %c0_i32_1 : i32, i32, i32, i32
  }
  func.func @transform_9(%arg0: i32, %arg1: i32) -> (i32, i32, i32) {
    %c0_i32 = arith.constant 0 : i32
    %c0_i32_0 = arith.constant 0 : i32
    %c0_i32_1 = arith.constant 0 : i32
    return %arg1, %c0_i32, %c0_i32_0 : i32, i32, i32
  }
  func.func @transform_10(%arg0: i32, %arg1: i32) -> (i32, i32, i32) {
    %c0_i32 = arith.constant 0 : i32
    %c0_i32_0 = arith.constant 0 : i32
    %c0_i32_1 = arith.constant 0 : i32
    return %arg1, %c0_i32, %c0_i32_0 : i32, i32, i32
  }
  func.func @transform_11(%arg0: i32, %arg1: i32) -> (i32, i32, i32) {
    %c0_i32 = arith.constant 0 : i32
    %c0_i32_0 = arith.constant 0 : i32
    %c0_i32_1 = arith.constant 0 : i32
    return %arg1, %c0_i32, %c0_i32_0 : i32, i32, i32
  }
  func.func @transform_12(%arg0: i32, %arg1: i32) -> (i32, i32, i32) {
    %c0_i32 = arith.constant 0 : i32
    %c0_i32_0 = arith.constant 0 : i32
    %c0_i32_1 = arith.constant 0 : i32
    return %arg1, %c0_i32, %c0_i32_0 : i32, i32, i32
  }
  func.func @transform_13(%arg0: i32, %arg1: i32) -> (i32, i32, i32) {
    %c0_i32 = arith.constant 0 : i32
    %c0_i32_0 = arith.constant 0 : i32
    %c0_i32_1 = arith.constant 0 : i32
    return %arg1, %c0_i32, %c0_i32_0 : i32, i32, i32
  }
  func.func @transform_14(%arg0: i32, %arg1: i32) -> (i32, i32, i32) {
    %c0_i32 = arith.constant 0 : i32
    %c0_i32_0 = arith.constant 0 : i32
    %c0_i32_1 = arith.constant 0 : i32
    return %arg1, %c0_i32, %c0_i32_0 : i32, i32, i32
  }
  func.func @transform_15(%arg0: i32, %arg1: i32) -> (i32, i32, i32) {
    %c0_i32 = arith.constant 0 : i32
    %c0_i32_0 = arith.constant 0 : i32
    %c0_i32_1 = arith.constant 0 : i32
    return %arg1, %c0_i32, %c0_i32_0 : i32, i32, i32
  }
  func.func @transform_16(%arg0: i32, %arg1: i32) -> (i32, i32, i32) {
    %c0_i32 = arith.constant 0 : i32
    %c0_i32_0 = arith.constant 0 : i32
    %c0_i32_1 = arith.constant 0 : i32
    return %arg1, %c0_i32, %c0_i32_0 : i32, i32, i32
  }
  func.func @transform_17(%arg0: i32, %arg1: i32) -> (i32, i32, i32) {
    %c0_i32 = arith.constant 0 : i32
    %c0_i32_0 = arith.constant 0 : i32
    %c0_i32_1 = arith.constant 0 : i32
    return %arg1, %c0_i32, %c0_i32_0 : i32, i32, i32
  }
  func.func @transform_18(%arg0: i32, %arg1: i32) -> (i32, i32) {
    %c0_i32 = arith.constant 0 : i32
    %c0_i32_0 = arith.constant 0 : i32
    %c0_i32_1 = arith.constant 0 : i32
    return %c0_i32, %c0_i32_0 : i32, i32
  }
  func.func @transform_19(%arg0: i32, %arg1: i32) -> (i32, i32) {
    %c0_i32 = arith.constant 0 : i32
    %c0_i32_0 = arith.constant 0 : i32
    %c0_i32_1 = arith.constant 0 : i32
    return %c0_i32, %c0_i32_0 : i32, i32
  }
  func.func @transform_20(%arg0: i32, %arg1: i32) -> (i32, i32, i32) {
    %c0_i32 = arith.constant 0 : i32
    %c0_i32_0 = arith.constant 0 : i32
    %c0_i32_1 = arith.constant 0 : i32
    return %arg0, %c0_i32, %c0_i32_0 : i32, i32, i32
  }
}

</mosaic_0001>

<llo_original>
// kernel: tpu_custom_call.1
$region0: #{tpu_custom_call.1}
  #allocation0 [shape = 'u32[]', space=smem, size = 0x4, offset = 0x4, fixed_abs, tag = 'smem constant byte address 0x4 - core index']
  #allocation1 [shape = 'u32[72,128]{1,0:T(1,128)}', space=vmem, size = 0x9000, scoped, tag = 'internal scratch']
  #allocation2 [shape = 'f32[8,32]{1,0:T(8,128)}', space=vmem, size = 0x1000, scoped, tag = 'scratch operand']
  %s0 = inlined_call_operand.vmem [shape: f32[2,8,32], index: 0, kind: input, shape index: {}]
  %s1 = inlined_call_operand.vmem [shape: f32[2,1,8], index: 1, kind: input, shape index: {}]
  %s2 = inlined_call_operand.vmem [shape: bf16[2,4,32,8], index: 2, kind: input, shape index: {}]
  %s3 = inlined_call_operand.vmem [shape: bf16[2,4,32,8], index: 3, kind: input, shape index: {}]
  %s4 = inlined_call_operand.vmem [shape: bf16[2,4,32,8], index: 4, kind: input, shape index: {}]
  %s5 = inlined_call_operand.vmem [shape: f32[2,4,1,8], index: 5, kind: input, shape index: {}]
  %s6 = inlined_call_operand.vmem [shape: f32[2,4,1,8], index: 6, kind: input, shape index: {}]
  %s7 = inlined_call_operand.vmem [shape: f32[2,4,1,8], index: 7, kind: input, shape index: {}]
  %s8 = inlined_call_operand.vmem [shape: bf16[2,4,8,32], index: 8, kind: input, shape index: {}]
  %s9 = inlined_call_operand.vmem [shape: f32[2,1,32], index: 9, kind: input, shape index: {}]
  %s10 = inlined_call_operand.vmem [shape: f32[2,1,32], index: 10, kind: input, shape index: {}]
  %s11 = inlined_call_operand.vmem [shape: f32[2,1,32], index: 11, kind: input, shape index: {}]
  %s12 = inlined_call_operand.vmem [shape: bf16[2,32,64], index: 12, kind: input, shape index: {}]
  %s13 = inlined_call_operand.vmem [shape: f32[2,1,64], index: 13, kind: input, shape index: {}]
  %s14 = inlined_call_operand.vmem [shape: bf16[2,64,32], index: 14, kind: input, shape index: {}]
  %s15 = inlined_call_operand.vmem [shape: f32[2,1,32], index: 15, kind: input, shape index: {}]
  %s16 = inlined_call_operand.vmem [shape: f32[2,1,32], index: 16, kind: input, shape index: {}]
  %s17 = inlined_call_operand.vmem [shape: f32[2,1,32], index: 17, kind: input, shape index: {}]
  %s18 = inlined_call_operand.vmem [shape: f32[1,32], index: 18, kind: input, shape index: {}]
  %s19 = inlined_call_operand.vmem [shape: f32[1,32], index: 19, kind: input, shape index: {}]
  %s20 = inlined_call_operand.hbm [shape: f32[2,1,32], index: 20, kind: output, shape index: {}]
  %s21 = sld [smem:[#allocation0]]
  $region121: #{tpu_custom_call.1} parent=0
    _
  %s23 = ssub.s32 1, %s21
  %s24 = scalar_select 0, %s23, %s21
  $region1: #{tpu_custom_call.1} parent=0
    #allocation3 [shape = 'u8[1024]{0}', space=vmem, size = 0x400, scoped, tag = 'output window, operand 0']
    #allocation4 [shape = 's32[2]{0}', space=sflag, size = 0x8, scoped, tag = 'scoped memory for tpu_custom_call.1']
    %25 = vsyncpa [#allocation4], 0
    %s26 = scalar_lea.sflag [#allocation4], 1
    %27 = vsyncpa %s26, 0
    loop: start=0, step=1, limit=6
    $region2: #{tpu_custom_call.1} parent=1 // loop_pre_header
      _
    $region3: #{tpu_custom_call.1} parent=1 // loop_header
      %s29 = sphi 0, %s33
      %p30 = scmp.ge.s32.totalorder %s29, 6
      %s36 = sphi 0, %s48
      %s37 = sphi 0, %s44
      %s38 = sphi 0, %s36
      %s39 = sphi 0, %s37
      %s40 = sphi 0, %s38
      %s41 = sphi 0, %s39
      %s51 = sphi 0, %s53
      %s54 = sphi 0, %s51
      %s55 = sphi 0, %s54
      %s71 = sphi 0, %s55
      %s77 = sphi 0, %s79
      %s80 = sphi 0, %s77
      %s81 = sphi 0, %s80
      %s97 = sphi 0, %s81
      %s103 = sphi 0, %s105
      %s106 = sphi 0, %s103
      %s107 = sphi 0, %s106
      %s123 = sphi 0, %s107
      %s129 = sphi 0, %s131
      %s132 = sphi 0, %s129
      %s133 = sphi 0, %s132
      %s149 = sphi 0, %s133
      %s155 = sphi 0, %s157
      %s158 = sphi 0, %s155
      %s159 = sphi 0, %s158
      %s175 = sphi 0, %s159
      %s181 = sphi 0, %s183
      %s184 = sphi 0, %s181
      %s185 = sphi 0, %s184
      %s201 = sphi 0, %s185
      %s207 = sphi 0, %s209
      %s210 = sphi 0, %s207
      %s211 = sphi 0, %s210
      %s227 = sphi 0, %s211
      %s233 = sphi 0, %s235
      %s236 = sphi 0, %s233
      %s237 = sphi 0, %s236
      %s253 = sphi 0, %s237
      %s259 = sphi 0, %s261
      %s262 = sphi 0, %s259
      %s263 = sphi 0, %s262
      %s279 = sphi 0, %s263
      %s285 = sphi 0, %s287
      %s288 = sphi 0, %s285
      %s289 = sphi 0, %s288
      %s305 = sphi 0, %s289
      %s311 = sphi 0, %s313
      %s314 = sphi 0, %s311
      %s315 = sphi 0, %s314
      %s331 = sphi 0, %s315
      %s337 = sphi 0, %s339
      %s340 = sphi 0, %s337
      %s341 = sphi 0, %s340
      %s357 = sphi 0, %s341
      %s363 = sphi 0, %s365
      %s366 = sphi 0, %s363
      %s367 = sphi 0, %s366
      %s383 = sphi 0, %s367
      %s389 = sphi 0, %s391
      %s392 = sphi 0, %s389
      %s393 = sphi 0, %s392
      %s409 = sphi 0, %s393
      %s415 = sphi 0, %s417
      %s418 = sphi 0, %s415
      %s419 = sphi 0, %s418
      %s435 = sphi 0, %s419
      %s441 = sphi 0, %s443
      %s444 = sphi 0, %s441
      %s445 = sphi 0, %s444
      %s461 = sphi 0, %s445
      %s467 = sphi 0, %s469
      %s470 = sphi 0, %s467
      %s471 = sphi 0, %s470
      %s487 = sphi 0, %s471
      %s493 = sphi 0, %s495
      %s496 = sphi 0, %s493
      %s497 = sphi 0, %s496
      %s513 = sphi 0, %s497
      %s517 = sphi 0, %s517
      %s519 = sphi 0, %s517
      %s520 = sphi 0, %s519
      %s534 = sphi 0, %s520
      %s538 = sphi 0, %s538
      %s540 = sphi 0, %s538
      %s541 = sphi 0, %s540
      %s555 = sphi 0, %s541
      %s561 = sphi 0, %s563
      %s564 = sphi 0, %s561
      %s565 = sphi 0, %s564
      %s581 = sphi 0, %s565
    $region4: #{tpu_custom_call.1} parent=1 // loop_header_branch
      %32 = sbr.rel (%p30) target = $region8
    $region5: #{tpu_custom_call.1} parent=1 // loop_body
      %s34 = ssub.s32 %s29, 1
      %s35 = ssub.s32 %s29, 2
      %s42 = sadd.s32 1, %s37
      %p43 = scmp.ge.s32.totalorder %s42, 2
      %s44 = scalar_select %p43, 0, %s42
      %s45 = sadd.s32 1, %s36
      %s46 = scalar_select %p43, %s45, %s36
      %p47 = scmp.ge.s32.totalorder %s46, 2
      %s48 = scalar_select %p47, 0, %s46
      %s49 = ssub.s32 %s36, %s48
      %p50 = scmp.eq.s32.totalorder %s49, 0
      %s52 = sadd.s32 %s51, 1
      %s53 = scalar_select %p50, %s51, %s52
      %p56 = pneg %p50
      %p57 = scmp.eq.s32.totalorder %s29, 3
      %p58 = por %p56, %p57
      %p59 = scmp.ne.s32.totalorder %s51, %s54
      %p60 = scmp.eq.s32.totalorder %s29, 0
      %p61 = por %p59, %p60
      %p62 = scmp.ne.s32.totalorder %s51, %s54
      %p63 = scmp.eq.s32.totalorder %s34, 3
      %p64 = por %p62, %p63
      %p65 = scmp.ne.s32.totalorder %s54, %s55
      %p66 = scmp.eq.s32.totalorder %s34, 0
      %p67 = por %p65, %p66
      %p68 = scmp.ne.s32.totalorder %s54, %s55
      %p69 = scmp.eq.s32.totalorder %s35, 3
      %p70 = por %p68, %p69
      %p72 = scmp.ne.s32.totalorder %s55, %s71
      %p73 = scmp.eq.s32.totalorder %s35, 0
      %p74 = por %p72, %p73
      %s75 = ssub.s32 %s36, %s48
      %p76 = scmp.eq.s32.totalorder %s75, 0
      %s78 = sadd.s32 %s77, 1
      %s79 = scalar_select %p76, %s77, %s78
      %p82 = pneg %p76
      %p83 = scmp.eq.s32.totalorder %s29, 3
      %p84 = por %p82, %p83
      %p85 = scmp.ne.s32.totalorder %s77, %s80
      %p86 = scmp.eq.s32.totalorder %s29, 0
      %p87 = por %p85, %p86
      %p88 = scmp.ne.s32.totalorder %s77, %s80
      %p89 = scmp.eq.s32.totalorder %s34, 3
      %p90 = por %p88, %p89
      %p91 = scmp.ne.s32.totalorder %s80, %s81
      %p92 = scmp.eq.s32.totalorder %s34, 0
      %p93 = por %p91, %p92
      %p94 = scmp.ne.s32.totalorder %s80, %s81
      %p95 = scmp.eq.s32.totalorder %s35, 3
      %p96 = por %p94, %p95
      %p98 = scmp.ne.s32.totalorder %s81, %s97
      %p99 = scmp.eq.s32.totalorder %s35, 0
      %p100 = por %p98, %p99
      %s101 = ssub.s32 %s37, %s44
      %p102 = scmp.eq.s32.totalorder %s101, 0
      %s104 = sadd.s32 %s103, 1
      %s105 = scalar_select %p102, %s103, %s104
      %p108 = pneg %p102
      %p109 = scmp.eq.s32.totalorder %s29, 3
      %p110 = por %p108, %p109
      %p111 = scmp.ne.s32.totalorder %s103, %s106
      %p112 = scmp.eq.s32.totalorder %s29, 0
      %p113 = por %p111, %p112
      %p114 = scmp.ne.s32.totalorder %s103, %s106
      %p115 = scmp.eq.s32.totalorder %s34, 3
      %p116 = por %p114, %p115
      %p117 = scmp.ne.s32.totalorder %s106, %s107
      %p118 = scmp.eq.s32.totalorder %s34, 0
      %p119 = por %p117, %p118
      %p120 = scmp.ne.s32.totalorder %s106, %s107
      %p121 = scmp.eq.s32.totalorder %s35, 3
      %p122 = por %p120, %p121
      %p124 = scmp.ne.s32.totalorder %s107, %s123
      %p125 = scmp.eq.s32.totalorder %s35, 0
      %p126 = por %p124, %p125
      %s127 = ssub.s32 %s37, %s44
      %p128 = scmp.eq.s32.totalorder %s127, 0
      %s130 = sadd.s32 %s129, 1
      %s131 = scalar_select %p128, %s129, %s130
      %p134 = pneg %p128
      %p135 = scmp.eq.s32.totalorder %s29, 3
      %p136 = por %p134, %p135
      %p137 = scmp.ne.s32.totalorder %s129, %s132
      %p138 = scmp.eq.s32.totalorder %s29, 0
      %p139 = por %p137, %p138
      %p140 = scmp.ne.s32.totalorder %s129, %s132
      %p141 = scmp.eq.s32.totalorder %s34, 3
      %p142 = por %p140, %p141
      %p143 = scmp.ne.s32.totalorder %s132, %s133
      %p144 = scmp.eq.s32.totalorder %s34, 0
      %p145 = por %p143, %p144
      %p146 = scmp.ne.s32.totalorder %s132, %s133
      %p147 = scmp.eq.s32.totalorder %s35, 3
      %p148 = por %p146, %p147
      %p150 = scmp.ne.s32.totalorder %s133, %s149
      %p151 = scmp.eq.s32.totalorder %s35, 0
      %p152 = por %p150, %p151
      %s153 = ssub.s32 %s37, %s44
      %p154 = scmp.eq.s32.totalorder %s153, 0
      %s156 = sadd.s32 %s155, 1
      %s157 = scalar_select %p154, %s155, %s156
      %p160 = pneg %p154
      %p161 = scmp.eq.s32.totalorder %s29, 3
      %p162 = por %p160, %p161
      %p163 = scmp.ne.s32.totalorder %s155, %s158
      %p164 = scmp.eq.s32.totalorder %s29, 0
      %p165 = por %p163, %p164
      %p166 = scmp.ne.s32.totalorder %s155, %s158
      %p167 = scmp.eq.s32.totalorder %s34, 3
      %p168 = por %p166, %p167
      %p169 = scmp.ne.s32.totalorder %s158, %s159
      %p170 = scmp.eq.s32.totalorder %s34, 0
      %p171 = por %p169, %p170
      %p172 = scmp.ne.s32.totalorder %s158, %s159
      %p173 = scmp.eq.s32.totalorder %s35, 3
      %p174 = por %p172, %p173
      %p176 = scmp.ne.s32.totalorder %s159, %s175
      %p177 = scmp.eq.s32.totalorder %s35, 0
      %p178 = por %p176, %p177
      %s179 = ssub.s32 %s37, %s44
      %p180 = scmp.eq.s32.totalorder %s179, 0
      %s182 = sadd.s32 %s181, 1
      %s183 = scalar_select %p180, %s181, %s182
      %p186 = pneg %p180
      %p187 = scmp.eq.s32.totalorder %s29, 3
      %p188 = por %p186, %p187
      %p189 = scmp.ne.s32.totalorder %s181, %s184
      %p190 = scmp.eq.s32.totalorder %s29, 0
      %p191 = por %p189, %p190
      %p192 = scmp.ne.s32.totalorder %s181, %s184
      %p193 = scmp.eq.s32.totalorder %s34, 3
      %p194 = por %p192, %p193
      %p195 = scmp.ne.s32.totalorder %s184, %s185
      %p196 = scmp.eq.s32.totalorder %s34, 0
      %p197 = por %p195, %p196
      %p198 = scmp.ne.s32.totalorder %s184, %s185
      %p199 = scmp.eq.s32.totalorder %s35, 3
      %p200 = por %p198, %p199
      %p202 = scmp.ne.s32.totalorder %s185, %s201
      %p203 = scmp.eq.s32.totalorder %s35, 0
      %p204 = por %p202, %p203
      %s205 = ssub.s32 %s37, %s44
      %p206 = scmp.eq.s32.totalorder %s205, 0
      %s208 = sadd.s32 %s207, 1
      %s209 = scalar_select %p206, %s207, %s208
      %p212 = pneg %p206
      %p213 = scmp.eq.s32.totalorder %s29, 3
      %p214 = por %p212, %p213
      %p215 = scmp.ne.s32.totalorder %s207, %s210
      %p216 = scmp.eq.s32.totalorder %s29, 0
      %p217 = por %p215, %p216
      %p218 = scmp.ne.s32.totalorder %s207, %s210
      %p219 = scmp.eq.s32.totalorder %s34, 3
      %p220 = por %p218, %p219
      %p221 = scmp.ne.s32.totalorder %s210, %s211
      %p222 = scmp.eq.s32.totalorder %s34, 0
      %p223 = por %p221, %p222
      %p224 = scmp.ne.s32.totalorder %s210, %s211
      %p225 = scmp.eq.s32.totalorder %s35, 3
      %p226 = por %p224, %p225
      %p228 = scmp.ne.s32.totalorder %s211, %s227
      %p229 = scmp.eq.s32.totalorder %s35, 0
      %p230 = por %p228, %p229
      %s231 = ssub.s32 %s37, %s44
      %p232 = scmp.eq.s32.totalorder %s231, 0
      %s234 = sadd.s32 %s233, 1
      %s235 = scalar_select %p232, %s233, %s234
      %p238 = pneg %p232
      %p239 = scmp.eq.s32.totalorder %s29, 3
      %p240 = por %p238, %p239
      %p241 = scmp.ne.s32.totalorder %s233, %s236
      %p242 = scmp.eq.s32.totalorder %s29, 0
      %p243 = por %p241, %p242
      %p244 = scmp.ne.s32.totalorder %s233, %s236
      %p245 = scmp.eq.s32.totalorder %s34, 3
      %p246 = por %p244, %p245
      %p247 = scmp.ne.s32.totalorder %s236, %s237
      %p248 = scmp.eq.s32.totalorder %s34, 0
      %p249 = por %p247, %p248
      %p250 = scmp.ne.s32.totalorder %s236, %s237
      %p251 = scmp.eq.s32.totalorder %s35, 3
      %p252 = por %p250, %p251
      %p254 = scmp.ne.s32.totalorder %s237, %s253
      %p255 = scmp.eq.s32.totalorder %s35, 0
      %p256 = por %p254, %p255
      %s257 = ssub.s32 %s37, %s44
      %p258 = scmp.eq.s32.totalorder %s257, 0
      %s260 = sadd.s32 %s259, 1
      %s261 = scalar_select %p258, %s259, %s260
      %p264 = pneg %p258
      %p265 = scmp.eq.s32.totalorder %s29, 3
      %p266 = por %p264, %p265
      %p267 = scmp.ne.s32.totalorder %s259, %s262
      %p268 = scmp.eq.s32.totalorder %s29, 0
      %p269 = por %p267, %p268
      %p270 = scmp.ne.s32.totalorder %s259, %s262
      %p271 = scmp.eq.s32.totalorder %s34, 3
      %p272 = por %p270, %p271
      %p273 = scmp.ne.s32.totalorder %s262, %s263
      %p274 = scmp.eq.s32.totalorder %s34, 0
      %p275 = por %p273, %p274
      %p276 = scmp.ne.s32.totalorder %s262, %s263
      %p277 = scmp.eq.s32.totalorder %s35, 3
      %p278 = por %p276, %p277
      %p280 = scmp.ne.s32.totalorder %s263, %s279
      %p281 = scmp.eq.s32.totalorder %s35, 0
      %p282 = por %p280, %p281
      %s283 = ssub.s32 %s37, %s44
      %p284 = scmp.eq.s32.totalorder %s283, 0
      %s286 = sadd.s32 %s285, 1
      %s287 = scalar_select %p284, %s285, %s286
      %p290 = pneg %p284
      %p291 = scmp.eq.s32.totalorder %s29, 3
      %p292 = por %p290, %p291
      %p293 = scmp.ne.s32.totalorder %s285, %s288
      %p294 = scmp.eq.s32.totalorder %s29, 0
      %p295 = por %p293, %p294
      %p296 = scmp.ne.s32.totalorder %s285, %s288
      %p297 = scmp.eq.s32.totalorder %s34, 3
      %p298 = por %p296, %p297
      %p299 = scmp.ne.s32.totalorder %s288, %s289
      %p300 = scmp.eq.s32.totalorder %s34, 0
      %p301 = por %p299, %p300
      %p302 = scmp.ne.s32.totalorder %s288, %s289
      %p303 = scmp.eq.s32.totalorder %s35, 3
      %p304 = por %p302, %p303
      %p306 = scmp.ne.s32.totalorder %s289, %s305
      %p307 = scmp.eq.s32.totalorder %s35, 0
      %p308 = por %p306, %p307
      %s309 = ssub.s32 %s37, %s44
      %p310 = scmp.eq.s32.totalorder %s309, 0
      %s312 = sadd.s32 %s311, 1
      %s313 = scalar_select %p310, %s311, %s312
      %p316 = pneg %p310
      %p317 = scmp.eq.s32.totalorder %s29, 3
      %p318 = por %p316, %p317
      %p319 = scmp.ne.s32.totalorder %s311, %s314
      %p320 = scmp.eq.s32.totalorder %s29, 0
      %p321 = por %p319, %p320
      %p322 = scmp.ne.s32.totalorder %s311, %s314
      %p323 = scmp.eq.s32.totalorder %s34, 3
      %p324 = por %p322, %p323
      %p325 = scmp.ne.s32.totalorder %s314, %s315
      %p326 = scmp.eq.s32.totalorder %s34, 0
      %p327 = por %p325, %p326
      %p328 = scmp.ne.s32.totalorder %s314, %s315
      %p329 = scmp.eq.s32.totalorder %s35, 3
      %p330 = por %p328, %p329
      %p332 = scmp.ne.s32.totalorder %s315, %s331
      %p333 = scmp.eq.s32.totalorder %s35, 0
      %p334 = por %p332, %p333
      %s335 = ssub.s32 %s37, %s44
      %p336 = scmp.eq.s32.totalorder %s335, 0
      %s338 = sadd.s32 %s337, 1
      %s339 = scalar_select %p336, %s337, %s338
      %p342 = pneg %p336
      %p343 = scmp.eq.s32.totalorder %s29, 3
      %p344 = por %p342, %p343
      %p345 = scmp.ne.s32.totalorder %s337, %s340
      %p346 = scmp.eq.s32.totalorder %s29, 0
      %p347 = por %p345, %p346
      %p348 = scmp.ne.s32.totalorder %s337, %s340
      %p349 = scmp.eq.s32.totalorder %s34, 3
      %p350 = por %p348, %p349
      %p351 = scmp.ne.s32.totalorder %s340, %s341
      %p352 = scmp.eq.s32.totalorder %s34, 0
      %p353 = por %p351, %p352
      %p354 = scmp.ne.s32.totalorder %s340, %s341
      %p355 = scmp.eq.s32.totalorder %s35, 3
      %p356 = por %p354, %p355
      %p358 = scmp.ne.s32.totalorder %s341, %s357
      %p359 = scmp.eq.s32.totalorder %s35, 0
      %p360 = por %p358, %p359
      %s361 = ssub.s32 %s37, %s44
      %p362 = scmp.eq.s32.totalorder %s361, 0
      %s364 = sadd.s32 %s363, 1
      %s365 = scalar_select %p362, %s363, %s364
      %p368 = pneg %p362
      %p369 = scmp.eq.s32.totalorder %s29, 3
      %p370 = por %p368, %p369
      %p371 = scmp.ne.s32.totalorder %s363, %s366
      %p372 = scmp.eq.s32.totalorder %s29, 0
      %p373 = por %p371, %p372
      %p374 = scmp.ne.s32.totalorder %s363, %s366
      %p375 = scmp.eq.s32.totalorder %s34, 3
      %p376 = por %p374, %p375
      %p377 = scmp.ne.s32.totalorder %s366, %s367
      %p378 = scmp.eq.s32.totalorder %s34, 0
      %p379 = por %p377, %p378
      %p380 = scmp.ne.s32.totalorder %s366, %s367
      %p381 = scmp.eq.s32.totalorder %s35, 3
      %p382 = por %p380, %p381
      %p384 = scmp.ne.s32.totalorder %s367, %s383
      %p385 = scmp.eq.s32.totalorder %s35, 0
      %p386 = por %p384, %p385
      %s387 = ssub.s32 %s37, %s44
      %p388 = scmp.eq.s32.totalorder %s387, 0
      %s390 = sadd.s32 %s389, 1
      %s391 = scalar_select %p388, %s389, %s390
      %p394 = pneg %p388
      %p395 = scmp.eq.s32.totalorder %s29, 3
      %p396 = por %p394, %p395
      %p397 = scmp.ne.s32.totalorder %s389, %s392
      %p398 = scmp.eq.s32.totalorder %s29, 0
      %p399 = por %p397, %p398
      %p400 = scmp.ne.s32.totalorder %s389, %s392
      %p401 = scmp.eq.s32.totalorder %s34, 3
      %p402 = por %p400, %p401
      %p403 = scmp.ne.s32.totalorder %s392, %s393
      %p404 = scmp.eq.s32.totalorder %s34, 0
      %p405 = por %p403, %p404
      %p406 = scmp.ne.s32.totalorder %s392, %s393
      %p407 = scmp.eq.s32.totalorder %s35, 3
      %p408 = por %p406, %p407
      %p410 = scmp.ne.s32.totalorder %s393, %s409
      %p411 = scmp.eq.s32.totalorder %s35, 0
      %p412 = por %p410, %p411
      %s413 = ssub.s32 %s37, %s44
      %p414 = scmp.eq.s32.totalorder %s413, 0
      %s416 = sadd.s32 %s415, 1
      %s417 = scalar_select %p414, %s415, %s416
      %p420 = pneg %p414
      %p421 = scmp.eq.s32.totalorder %s29, 3
      %p422 = por %p420, %p421
      %p423 = scmp.ne.s32.totalorder %s415, %s418
      %p424 = scmp.eq.s32.totalorder %s29, 0
      %p425 = por %p423, %p424
      %p426 = scmp.ne.s32.totalorder %s415, %s418
      %p427 = scmp.eq.s32.totalorder %s34, 3
      %p428 = por %p426, %p427
      %p429 = scmp.ne.s32.totalorder %s418, %s419
      %p430 = scmp.eq.s32.totalorder %s34, 0
      %p431 = por %p429, %p430
      %p432 = scmp.ne.s32.totalorder %s418, %s419
      %p433 = scmp.eq.s32.totalorder %s35, 3
      %p434 = por %p432, %p433
      %p436 = scmp.ne.s32.totalorder %s419, %s435
      %p437 = scmp.eq.s32.totalorder %s35, 0
      %p438 = por %p436, %p437
      %s439 = ssub.s32 %s37, %s44
      %p440 = scmp.eq.s32.totalorder %s439, 0
      %s442 = sadd.s32 %s441, 1
      %s443 = scalar_select %p440, %s441, %s442
      %p446 = pneg %p440
      %p447 = scmp.eq.s32.totalorder %s29, 3
      %p448 = por %p446, %p447
      %p449 = scmp.ne.s32.totalorder %s441, %s444
      %p450 = scmp.eq.s32.totalorder %s29, 0
      %p451 = por %p449, %p450
      %p452 = scmp.ne.s32.totalorder %s441, %s444
      %p453 = scmp.eq.s32.totalorder %s34, 3
      %p454 = por %p452, %p453
      %p455 = scmp.ne.s32.totalorder %s444, %s445
      %p456 = scmp.eq.s32.totalorder %s34, 0
      %p457 = por %p455, %p456
      %p458 = scmp.ne.s32.totalorder %s444, %s445
      %p459 = scmp.eq.s32.totalorder %s35, 3
      %p460 = por %p458, %p459
      %p462 = scmp.ne.s32.totalorder %s445, %s461
      %p463 = scmp.eq.s32.totalorder %s35, 0
      %p464 = por %p462, %p463
      %s465 = ssub.s32 %s37, %s44
      %p466 = scmp.eq.s32.totalorder %s465, 0
      %s468 = sadd.s32 %s467, 1
      %s469 = scalar_select %p466, %s467, %s468
      %p472 = pneg %p466
      %p473 = scmp.eq.s32.totalorder %s29, 3
      %p474 = por %p472, %p473
      %p475 = scmp.ne.s32.totalorder %s467, %s470
      %p476 = scmp.eq.s32.totalorder %s29, 0
      %p477 = por %p475, %p476
      %p478 = scmp.ne.s32.totalorder %s467, %s470
      %p479 = scmp.eq.s32.totalorder %s34, 3
      %p480 = por %p478, %p479
      %p481 = scmp.ne.s32.totalorder %s470, %s471
      %p482 = scmp.eq.s32.totalorder %s34, 0
      %p483 = por %p481, %p482
      %p484 = scmp.ne.s32.totalorder %s470, %s471
      %p485 = scmp.eq.s32.totalorder %s35, 3
      %p486 = por %p484, %p485
      %p488 = scmp.ne.s32.totalorder %s471, %s487
      %p489 = scmp.eq.s32.totalorder %s35, 0
      %p490 = por %p488, %p489
      %s491 = ssub.s32 %s37, %s44
      %p492 = scmp.eq.s32.totalorder %s491, 0
      %s494 = sadd.s32 %s493, 1
      %s495 = scalar_select %p492, %s493, %s494
      %p498 = pneg %p492
      %p499 = scmp.eq.s32.totalorder %s29, 3
      %p500 = por %p498, %p499
      %p501 = scmp.ne.s32.totalorder %s493, %s496
      %p502 = scmp.eq.s32.totalorder %s29, 0
      %p503 = por %p501, %p502
      %p504 = scmp.ne.s32.totalorder %s493, %s496
      %p505 = scmp.eq.s32.totalorder %s34, 3
      %p506 = por %p504, %p505
      %p507 = scmp.ne.s32.totalorder %s496, %s497
      %p508 = scmp.eq.s32.totalorder %s34, 0
      %p509 = por %p507, %p508
      %p510 = scmp.ne.s32.totalorder %s496, %s497
      %p511 = scmp.eq.s32.totalorder %s35, 3
      %p512 = por %p510, %p511
      %p514 = scmp.ne.s32.totalorder %s497, %s513
      %p515 = scmp.eq.s32.totalorder %s35, 0
      %p516 = por %p514, %p515
      %s518 = sadd.s32 %s517, 1
      %p521 = scmp.eq.s32.totalorder %s29, 3
      %p522 = scmp.ne.s32.totalorder %s517, %s519
      %p523 = scmp.eq.s32.totalorder %s29, 0
      %p524 = por %p522, %p523
      %p525 = scmp.ne.s32.totalorder %s517, %s519
      %p526 = scmp.eq.s32.totalorder %s34, 3
      %p527 = por %p525, %p526
      %p528 = scmp.ne.s32.totalorder %s519, %s520
      %p529 = scmp.eq.s32.totalorder %s34, 0
      %p530 = por %p528, %p529
      %p531 = scmp.ne.s32.totalorder %s519, %s520
      %p532 = scmp.eq.s32.totalorder %s35, 3
      %p533 = por %p531, %p532
      %p535 = scmp.ne.s32.totalorder %s520, %s534
      %p536 = scmp.eq.s32.totalorder %s35, 0
      %p537 = por %p535, %p536
      %s539 = sadd.s32 %s538, 1
      %p542 = scmp.eq.s32.totalorder %s29, 3
      %p543 = scmp.ne.s32.totalorder %s538, %s540
      %p544 = scmp.eq.s32.totalorder %s29, 0
      %p545 = por %p543, %p544
      %p546 = scmp.ne.s32.totalorder %s538, %s540
      %p547 = scmp.eq.s32.totalorder %s34, 3
      %p548 = por %p546, %p547
      %p549 = scmp.ne.s32.totalorder %s540, %s541
      %p550 = scmp.eq.s32.totalorder %s34, 0
      %p551 = por %p549, %p550
      %p552 = scmp.ne.s32.totalorder %s540, %s541
      %p553 = scmp.eq.s32.totalorder %s35, 3
      %p554 = por %p552, %p553
      %p556 = scmp.ne.s32.totalorder %s541, %s555
      %p557 = scmp.eq.s32.totalorder %s35, 0
      %p558 = por %p556, %p557
      %s559 = ssub.s32 %s36, %s48
      %p560 = scmp.eq.s32.totalorder %s559, 0
      %s562 = sadd.s32 %s561, 1
      %s563 = scalar_select %p560, %s561, %s562
      %p566 = pneg %p560
      %p567 = scmp.eq.s32.totalorder %s29, 3
      %p568 = por %p566, %p567
      %p569 = scmp.ne.s32.totalorder %s561, %s564
      %p570 = scmp.eq.s32.totalorder %s29, 0
      %p571 = por %p569, %p570
      %p572 = scmp.ne.s32.totalorder %s561, %s564
      %p573 = scmp.eq.s32.totalorder %s34, 3
      %p574 = por %p572, %p573
      %p575 = scmp.ne.s32.totalorder %s564, %s565
      %p576 = scmp.eq.s32.totalorder %s34, 0
      %p577 = por %p575, %p576
      %p578 = scmp.ne.s32.totalorder %s564, %s565
      %p579 = scmp.eq.s32.totalorder %s35, 3
      %p580 = por %p578, %p579
      %p582 = scmp.ne.s32.totalorder %s565, %s581
      %p583 = scmp.eq.s32.totalorder %s35, 0
      %p584 = por %p582, %p583
      %p585 = scmp.le.s32.totalorder 1, %s29
      %p586 = scmp.lt.s32.totalorder %s29, 5
      %p587 = pnand %p585, %p586
      %p588 = pneg %p587
      // Predicated region
      $region9: #{tpu_custom_call.1} parent=5 // pred_check
        _
      $region10: #{tpu_custom_call.1} parent=5 // pred_check_branch
        %590 = sbr.rel (%p587) target = $region12
      $region11: #{tpu_custom_call.1} parent=5 // pred_region
        %s591 = ssub.s32 %s29, 1
        // Predicated region
        $region13: #{tpu_custom_call.1} parent=11 // pred_check
          %p592 = pneg %p530
        $region14: #{tpu_custom_call.1} parent=11 // pred_check_branch
          %594 = sbr.rel (%p592) target = $region16
        $region15: #{tpu_custom_call.1} parent=11 // pred_region
          _
        $region16: #{tpu_custom_call.1} parent=11 // pred_fallthru
          _
        // Predicated region
        $region17: #{tpu_custom_call.1} parent=11 // pred_check
          %p595 = pneg %p551
        $region18: #{tpu_custom_call.1} parent=11 // pred_check_branch
          %597 = sbr.rel (%p595) target = $region20
        $region19: #{tpu_custom_call.1} parent=11 // pred_region
          _
        $region20: #{tpu_custom_call.1} parent=11 // pred_fallthru
          _
      $region12: #{tpu_custom_call.1} parent=5 // pred_fallthru
        _
      %p598 = scmp.lt.s32.totalorder %s29, 4
      // Predicated region
      $region21: #{tpu_custom_call.1} parent=5 // pred_check
        %p599 = pneg %p598
      $region22: #{tpu_custom_call.1} parent=5 // pred_check_branch
        %601 = sbr.rel (%p599) target = $region24
      $region23: #{tpu_custom_call.1} parent=5 // pred_region
        // Predicated region
        $region25: #{tpu_custom_call.1} parent=23 // pred_check
          %p602 = pneg %p61
        $region26: #{tpu_custom_call.1} parent=23 // pred_check_branch
          %604 = sbr.rel (%p602) target = $region28
        $region27: #{tpu_custom_call.1} parent=23 // pred_region
          %p605 = scmp.lt.s32.totalorder %s36, 1
          %s606 = scalar_select %p605, %s36, 1
          %s607 = smul.addr %s606, 8
          %s608 = scalar_lea.vmem %s0, %s607
        $region28: #{tpu_custom_call.1} parent=23 // pred_fallthru
          _
        // Predicated region
        $region29: #{tpu_custom_call.1} parent=23 // pred_check
          %p609 = pneg %p87
        $region30: #{tpu_custom_call.1} parent=23 // pred_check_branch
          %611 = sbr.rel (%p609) target = $region32
        $region31: #{tpu_custom_call.1} parent=23 // pred_region
          %p612 = scmp.lt.s32.totalorder %s36, 1
          %s613 = scalar_select %p612, %s36, 1
          %s614 = scalar_lea.vmem %s1, %s613
        $region32: #{tpu_custom_call.1} parent=23 // pred_fallthru
          _
        // Predicated region
        $region33: #{tpu_custom_call.1} parent=23 // pred_check
          %p615 = pneg %p113
        $region34: #{tpu_custom_call.1} parent=23 // pred_check_branch
          %617 = sbr.rel (%p615) target = $region36
        $region35: #{tpu_custom_call.1} parent=23 // pred_region
          %p618 = scmp.lt.s32.totalorder %s37, 1
          %s619 = scalar_select %p618, %s37, 1
          %s620 = smul.addr %s619, 16
          %s621 = smul.addr %s620, 4
          %s622 = scalar_lea.vmem %s2, %s621
        $region36: #{tpu_custom_call.1} parent=23 // pred_fallthru
          _
        // Predicated region
        $region37: #{tpu_custom_call.1} parent=23 // pred_check
          %p623 = pneg %p139
        $region38: #{tpu_custom_call.1} parent=23 // pred_check_branch
          %625 = sbr.rel (%p623) target = $region40
        $region39: #{tpu_custom_call.1} parent=23 // pred_region
          %p626 = scmp.lt.s32.totalorder %s37, 1
          %s627 = scalar_select %p626, %s37, 1
          %s628 = smul.addr %s627, 16
          %s629 = smul.addr %s628, 4
          %s630 = scalar_lea.vmem %s3, %s629
        $region40: #{tpu_custom_call.1} parent=23 // pred_fallthru
          _
        // Predicated region
        $region41: #{tpu_custom_call.1} parent=23 // pred_check
          %p631 = pneg %p165
        $region42: #{tpu_custom_call.1} parent=23 // pred_check_branch
          %633 = sbr.rel (%p631) target = $region44
        $region43: #{tpu_custom_call.1} parent=23 // pred_region
          %p634 = scmp.lt.s32.totalorder %s37, 1
          %s635 = scalar_select %p634, %s37, 1
          %s636 = smul.addr %s635, 16
          %s637 = smul.addr %s636, 4
          %s638 = scalar_lea.vmem %s4, %s637
        $region44: #{tpu_custom_call.1} parent=23 // pred_fallthru
          _
        // Predicated region
        $region45: #{tpu_custom_call.1} parent=23 // pred_check
          %p639 = pneg %p191
        $region46: #{tpu_custom_call.1} parent=23 // pred_check_branch
          %641 = sbr.rel (%p639) target = $region48
        $region47: #{tpu_custom_call.1} parent=23 // pred_region
          %p642 = scmp.lt.s32.totalorder %s37, 1
          %s643 = scalar_select %p642, %s37, 1
          %s644 = smul.addr %s643, 4
          %s645 = scalar_lea.vmem %s5, %s644
        $region48: #{tpu_custom_call.1} parent=23 // pred_fallthru
          _
        // Predicated region
        $region49: #{tpu_custom_call.1} parent=23 // pred_check
          %p646 = pneg %p217
        $region50: #{tpu_custom_call.1} parent=23 // pred_check_branch
          %648 = sbr.rel (%p646) target = $region52
        $region51: #{tpu_custom_call.1} parent=23 // pred_region
          %p649 = scmp.lt.s32.totalorder %s37, 1
          %s650 = scalar_select %p649, %s37, 1
          %s651 = smul.addr %s650, 4
          %s652 = scalar_lea.vmem %s6, %s651
        $region52: #{tpu_custom_call.1} parent=23 // pred_fallthru
          _
        // Predicated region
        $region53: #{tpu_custom_call.1} parent=23 // pred_check
          %p653 = pneg %p243
        $region54: #{tpu_custom_call.1} parent=23 // pred_check_branch
          %655 = sbr.rel (%p653) target = $region56
        $region55: #{tpu_custom_call.1} parent=23 // pred_region
          %p656 = scmp.lt.s32.totalorder %s37, 1
          %s657 = scalar_select %p656, %s37, 1
          %s658 = smul.addr %s657, 4
          %s659 = scalar_lea.vmem %s7, %s658
        $region56: #{tpu_custom_call.1} parent=23 // pred_fallthru
          _
        // Predicated region
        $region57: #{tpu_custom_call.1} parent=23 // pred_check
          %p660 = pneg %p269
        $region58: #{tpu_custom_call.1} parent=23 // pred_check_branch
          %662 = sbr.rel (%p660) target = $region60
        $region59: #{tpu_custom_call.1} parent=23 // pred_region
          %p663 = scmp.lt.s32.totalorder %s37, 1
          %s664 = scalar_select %p663, %s37, 1
          %s665 = smul.addr %s664, 4
          %s666 = smul.addr %s665, 4
          %s667 = scalar_lea.vmem %s8, %s666
        $region60: #{tpu_custom_call.1} parent=23 // pred_fallthru
          _
        // Predicated region
        $region61: #{tpu_custom_call.1} parent=23 // pred_check
          %p668 = pneg %p295
        $region62: #{tpu_custom_call.1} parent=23 // pred_check_branch
          %670 = sbr.rel (%p668) target = $region64
        $region63: #{tpu_custom_call.1} parent=23 // pred_region
          %p671 = scmp.lt.s32.totalorder %s37, 1
          %s672 = scalar_select %p671, %s37, 1
          %s673 = scalar_lea.vmem %s9, %s672
        $region64: #{tpu_custom_call.1} parent=23 // pred_fallthru
          _
        // Predicated region
        $region65: #{tpu_custom_call.1} parent=23 // pred_check
          %p674 = pneg %p321
        $region66: #{tpu_custom_call.1} parent=23 // pred_check_branch
          %676 = sbr.rel (%p674) target = $region68
        $region67: #{tpu_custom_call.1} parent=23 // pred_region
          %p677 = scmp.lt.s32.totalorder %s37, 1
          %s678 = scalar_select %p677, %s37, 1
          %s679 = scalar_lea.vmem %s10, %s678
        $region68: #{tpu_custom_call.1} parent=23 // pred_fallthru
          _
        // Predicated region
        $region69: #{tpu_custom_call.1} parent=23 // pred_check
          %p680 = pneg %p347
        $region70: #{tpu_custom_call.1} parent=23 // pred_check_branch
          %682 = sbr.rel (%p680) target = $region72
        $region71: #{tpu_custom_call.1} parent=23 // pred_region
          %p683 = scmp.lt.s32.totalorder %s37, 1
          %s684 = scalar_select %p683, %s37, 1
          %s685 = scalar_lea.vmem %s11, %s684
        $region72: #{tpu_custom_call.1} parent=23 // pred_fallthru
          _
        // Predicated region
        $region73: #{tpu_custom_call.1} parent=23 // pred_check
          %p686 = pneg %p373
        $region74: #{tpu_custom_call.1} parent=23 // pred_check_branch
          %688 = sbr.rel (%p686) target = $region76
        $region75: #{tpu_custom_call.1} parent=23 // pred_region
          %p689 = scmp.lt.s32.totalorder %s37, 1
          %s690 = scalar_select %p689, %s37, 1
          %s691 = smul.addr %s690, 4
          %s692 = smul.addr %s691, 4
          %s693 = scalar_lea.vmem %s12, %s692
        $region76: #{tpu_custom_call.1} parent=23 // pred_fallthru
          _
        // Predicated region
        $region77: #{tpu_custom_call.1} parent=23 // pred_check
          %p694 = pneg %p399
        $region78: #{tpu_custom_call.1} parent=23 // pred_check_branch
          %696 = sbr.rel (%p694) target = $region80
        $region79: #{tpu_custom_call.1} parent=23 // pred_region
          %p697 = scmp.lt.s32.totalorder %s37, 1
          %s698 = scalar_select %p697, %s37, 1
          %s699 = scalar_lea.vmem %s13, %s698
        $region80: #{tpu_custom_call.1} parent=23 // pred_fallthru
          _
        // Predicated region
        $region81: #{tpu_custom_call.1} parent=23 // pred_check
          %p700 = pneg %p425
        $region82: #{tpu_custom_call.1} parent=23 // pred_check_branch
          %702 = sbr.rel (%p700) target = $region84
        $region83: #{tpu_custom_call.1} parent=23 // pred_region
          %p703 = scmp.lt.s32.totalorder %s37, 1
          %s704 = scalar_select %p703, %s37, 1
          %s705 = smul.addr %s704, 8
          %s706 = smul.addr %s705, 4
          %s707 = scalar_lea.vmem %s14, %s706
        $region84: #{tpu_custom_call.1} parent=23 // pred_fallthru
          _
        // Predicated region
        $region85: #{tpu_custom_call.1} parent=23 // pred_check
          %p708 = pneg %p451
        $region86: #{tpu_custom_call.1} parent=23 // pred_check_branch
          %710 = sbr.rel (%p708) target = $region88
        $region87: #{tpu_custom_call.1} parent=23 // pred_region
          %p711 = scmp.lt.s32.totalorder %s37, 1
          %s712 = scalar_select %p711, %s37, 1
          %s713 = scalar_lea.vmem %s15, %s712
        $region88: #{tpu_custom_call.1} parent=23 // pred_fallthru
          _
        // Predicated region
        $region89: #{tpu_custom_call.1} parent=23 // pred_check
          %p714 = pneg %p477
        $region90: #{tpu_custom_call.1} parent=23 // pred_check_branch
          %716 = sbr.rel (%p714) target = $region92
        $region91: #{tpu_custom_call.1} parent=23 // pred_region
          %p717 = scmp.lt.s32.totalorder %s37, 1
          %s718 = scalar_select %p717, %s37, 1
          %s719 = scalar_lea.vmem %s16, %s718
        $region92: #{tpu_custom_call.1} parent=23 // pred_fallthru
          _
        // Predicated region
        $region93: #{tpu_custom_call.1} parent=23 // pred_check
          %p720 = pneg %p503
        $region94: #{tpu_custom_call.1} parent=23 // pred_check_branch
          %722 = sbr.rel (%p720) target = $region96
        $region95: #{tpu_custom_call.1} parent=23 // pred_region
          %p723 = scmp.lt.s32.totalorder %s37, 1
          %s724 = scalar_select %p723, %s37, 1
          %s725 = scalar_lea.vmem %s17, %s724
        $region96: #{tpu_custom_call.1} parent=23 // pred_fallthru
          _
      $region24: #{tpu_custom_call.1} parent=5 // pred_fallthru
        _
      %p726 = scmp.le.s32.totalorder 1, %s29
      %p727 = scmp.lt.s32.totalorder %s29, 5
      %p728 = pnand %p726, %p727
      %p729 = pneg %p728
      // Predicated region
      $region97: #{tpu_custom_call.1} parent=5 // pred_check
        _
      $region98: #{tpu_custom_call.1} parent=5 // pred_check_branch
        %731 = sbr.rel (%p728) target = $region100
      $region99: #{tpu_custom_call.1} parent=5 // pred_region
        %s732 = ssub.s32 %s29, 1
        %p733 = scmp.lt.s32.totalorder %s38, 1
        %s734 = scalar_select %p733, %s38, 1
        %s735 = smul.addr %s734, 8
        %s736 = scalar_lea.vmem %s0, %s735
        %p737 = pneg %p67
        %p738 = pneg %p64
        %p739 = scmp.lt.s32.totalorder %s38, 1
        %s740 = scalar_select %p739, %s38, 1
        %s741 = scalar_lea.vmem %s1, %s740
        %p742 = pneg %p93
        %p743 = pneg %p90
        %p744 = scmp.lt.s32.totalorder %s39, 1
        %s745 = scalar_select %p744, %s39, 1
        %s746 = smul.addr %s745, 16
        %s747 = smul.addr %s746, 4
        %s748 = scalar_lea.vmem %s2, %s747
        %p749 = pneg %p119
        %p750 = pneg %p116
        %p751 = scmp.lt.s32.totalorder %s39, 1
        %s752 = scalar_select %p751, %s39, 1
        %s753 = smul.addr %s752, 16
        %s754 = smul.addr %s753, 4
        %s755 = scalar_lea.vmem %s3, %s754
        %p756 = pneg %p145
        %p757 = pneg %p142
        %p758 = scmp.lt.s32.totalorder %s39, 1
        %s759 = scalar_select %p758, %s39, 1
        %s760 = smul.addr %s759, 16
        %s761 = smul.addr %s760, 4
        %s762 = scalar_lea.vmem %s4, %s761
        %p763 = pneg %p171
        %p764 = pneg %p168
        %p765 = scmp.lt.s32.totalorder %s39, 1
        %s766 = scalar_select %p765, %s39, 1
        %s767 = smul.addr %s766, 4
        %s768 = scalar_lea.vmem %s5, %s767
        %p769 = pneg %p197
        %p770 = pneg %p194
        %p771 = scmp.lt.s32.totalorder %s39, 1
        %s772 = scalar_select %p771, %s39, 1
        %s773 = smul.addr %s772, 4
        %s774 = scalar_lea.vmem %s6, %s773
        %p775 = pneg %p223
        %p776 = pneg %p220
        %p777 = scmp.lt.s32.totalorder %s39, 1
        %s778 = scalar_select %p777, %s39, 1
        %s779 = smul.addr %s778, 4
        %s780 = scalar_lea.vmem %s7, %s779
        %p781 = pneg %p249
        %p782 = pneg %p246
        %p783 = scmp.lt.s32.totalorder %s39, 1
        %s784 = scalar_select %p783, %s39, 1
        %s785 = smul.addr %s784, 4
        %s786 = smul.addr %s785, 4
        %s787 = scalar_lea.vmem %s8, %s786
        %p788 = pneg %p275
        %p789 = pneg %p272
        %p790 = scmp.lt.s32.totalorder %s39, 1
        %s791 = scalar_select %p790, %s39, 1
        %s792 = scalar_lea.vmem %s9, %s791
        %p793 = pneg %p301
        %p794 = pneg %p298
        %p795 = scmp.lt.s32.totalorder %s39, 1
        %s796 = scalar_select %p795, %s39, 1
        %s797 = scalar_lea.vmem %s10, %s796
        %p798 = pneg %p327
        %p799 = pneg %p324
        %p800 = scmp.lt.s32.totalorder %s39, 1
        %s801 = scalar_select %p800, %s39, 1
        %s802 = scalar_lea.vmem %s11, %s801
        %p803 = pneg %p353
        %p804 = pneg %p350
        %p805 = scmp.lt.s32.totalorder %s39, 1
        %s806 = scalar_select %p805, %s39, 1
        %s807 = smul.addr %s806, 4
        %s808 = smul.addr %s807, 4
        %s809 = scalar_lea.vmem %s12, %s808
        %p810 = pneg %p379
        %p811 = pneg %p376
        %p812 = scmp.lt.s32.totalorder %s39, 1
        %s813 = scalar_select %p812, %s39, 1
        %s814 = scalar_lea.vmem %s13, %s813
        %p815 = pneg %p405
        %p816 = pneg %p402
        %p817 = scmp.lt.s32.totalorder %s39, 1
        %s818 = scalar_select %p817, %s39, 1
        %s819 = smul.addr %s818, 8
        %s820 = smul.addr %s819, 4
        %s821 = scalar_lea.vmem %s14, %s820
        %p822 = pneg %p431
        %p823 = pneg %p428
        %p824 = scmp.lt.s32.totalorder %s39, 1
        %s825 = scalar_select %p824, %s39, 1
        %s826 = scalar_lea.vmem %s15, %s825
        %p827 = pneg %p457
        %p828 = pneg %p454
        %p829 = scmp.lt.s32.totalorder %s39, 1
        %s830 = scalar_select %p829, %s39, 1
        %s831 = scalar_lea.vmem %s16, %s830
        %p832 = pneg %p483
        %p833 = pneg %p480
        %p834 = scmp.lt.s32.totalorder %s39, 1
        %s835 = scalar_select %p834, %s39, 1
        %s836 = scalar_lea.vmem %s17, %s835
        %p837 = pneg %p509
        %p838 = pneg %p506
        %p839 = pneg %p530
        %p840 = pneg %p527
        %p841 = pneg %p551
        %p842 = pneg %p548
        %p843 = pneg %p577
        %p844 = pneg %p574
        %s845 = sand.u32 %s564, 1
        %s846 = scalar_lea.sflag [#allocation4], %s845
        %s847 = sand.u32 %s564, 1
        %s848 = scalar_lea.vmem [#allocation3], %s847
        %p849 = scmp.lt.s32.totalorder %s38, 1
        %s850 = scalar_select %p849, %s38, 1
        %s851 = smul.addr %s850, 8
        %s852 = scalar_lea.vmem %s0, %s851
        %p853 = scmp.lt.s32.totalorder %s38, 1
        %s854 = scalar_select %p853, %s38, 1
        %s855 = scalar_lea.vmem %s1, %s854
        %p856 = scmp.lt.s32.totalorder %s39, 1
        %s857 = scalar_select %p856, %s39, 1
        %s858 = smul.addr %s857, 16
        %s859 = smul.addr %s858, 4
        %s860 = scalar_lea.vmem %s2, %s859
        %p861 = scmp.lt.s32.totalorder %s39, 1
        %s862 = scalar_select %p861, %s39, 1
        %s863 = smul.addr %s862, 16
        %s864 = smul.addr %s863, 4
        %s865 = scalar_lea.vmem %s3, %s864
        %p866 = scmp.lt.s32.totalorder %s39, 1
        %s867 = scalar_select %p866, %s39, 1
        %s868 = smul.addr %s867, 16
        %s869 = smul.addr %s868, 4
        %s870 = scalar_lea.vmem %s4, %s869
        %p871 = scmp.lt.s32.totalorder %s39, 1
        %s872 = scalar_select %p871, %s39, 1
        %s873 = smul.addr %s872, 4
        %s874 = scalar_lea.vmem %s5, %s873
        %p875 = scmp.lt.s32.totalorder %s39, 1
        %s876 = scalar_select %p875, %s39, 1
        %s877 = smul.addr %s876, 4
        %s878 = scalar_lea.vmem %s6, %s877
        %p879 = scmp.lt.s32.totalorder %s39, 1
        %s880 = scalar_select %p879, %s39, 1
        %s881 = smul.addr %s880, 4
        %s882 = scalar_lea.vmem %s7, %s881
        %p883 = scmp.lt.s32.totalorder %s39, 1
        %s884 = scalar_select %p883, %s39, 1
        %s885 = smul.addr %s884, 4
        %s886 = smul.addr %s885, 4
        %s887 = scalar_lea.vmem %s8, %s886
        %p888 = scmp.lt.s32.totalorder %s39, 1
        %s889 = scalar_select %p888, %s39, 1
        %s890 = scalar_lea.vmem %s9, %s889
        %p891 = scmp.lt.s32.totalorder %s39, 1
        %s892 = scalar_select %p891, %s39, 1
        %s893 = scalar_lea.vmem %s10, %s892
        %p894 = scmp.lt.s32.totalorder %s39, 1
        %s895 = scalar_select %p894, %s39, 1
        %s896 = scalar_lea.vmem %s11, %s895
        %p897 = scmp.lt.s32.totalorder %s39, 1
        %s898 = scalar_select %p897, %s39, 1
        %s899 = smul.addr %s898, 4
        %s900 = smul.addr %s899, 4
        %s901 = scalar_lea.vmem %s12, %s900
        %p902 = scmp.lt.s32.totalorder %s39, 1
        %s903 = scalar_select %p902, %s39, 1
        %s904 = scalar_lea.vmem %s13, %s903
        %p905 = scmp.lt.s32.totalorder %s39, 1
        %s906 = scalar_select %p905, %s39, 1
        %s907 = smul.addr %s906, 8
        %s908 = smul.addr %s907, 4
        %s909 = scalar_lea.vmem %s14, %s908
        %p910 = scmp.lt.s32.totalorder %s39, 1
        %s911 = scalar_select %p910, %s39, 1
        %s912 = scalar_lea.vmem %s15, %s911
        %p913 = scmp.lt.s32.totalorder %s39, 1
        %s914 = scalar_select %p913, %s39, 1
        %s915 = scalar_lea.vmem %s16, %s914
        %p916 = scmp.lt.s32.totalorder %s39, 1
        %s917 = scalar_select %p916, %s39, 1
        %s918 = scalar_lea.vmem %s17, %s917
        %p920 = scmp.eq.s32.totalorder %s39, 0
        // Predicated region
        $region101: #{tpu_custom_call.1} parent=99 // pred_check
          %p921 = pneg %p920
        $region102: #{tpu_custom_call.1} parent=99 // pred_check_branch
          %923 = sbr.rel (%p921) target = $region104
        $region103: #{tpu_custom_call.1} parent=99 // pred_region
          %v924 = vld [vmem:[%s852] sm:$0xff]
          %vm925 = vcmask 261120
          %926 = vst.msk [vmem:[#allocation2] sm:$0xff] %vm925, %v924
        $region104: #{tpu_custom_call.1} parent=99 // pred_fallthru
          _
        %v927 = vld [vmem:[#allocation2] sm:$0xff]
        %v928 = vld [vmem:[%s855] sm:$0x1]
        %v929 = vmul.f32 %v928, -1e+30
        %v930 = vpack.c.bf16 %v927, %v927
        %v931 = vld [vmem:[%s860] sm:$0xf]
        %v932 = vld [vmem:[%s860 + $0x4] sm:$0xf]
        %v933 = vld [vmem:[%s860 + $0x8] sm:$0xf]
        %v934 = vld [vmem:[%s860 + $0xc] sm:$0xf]
        %v935 = vld [vmem:[%s860 + $0x10] sm:$0xf]
        %v936 = vld [vmem:[%s860 + $0x14] sm:$0xf]
        %v937 = vld [vmem:[%s860 + $0x18] sm:$0xf]
        %v938 = vld [vmem:[%s860 + $0x1c] sm:$0xf]
        %v939 = vld [vmem:[%s860 + $0x20] sm:$0xf]
        %v940 = vld [vmem:[%s860 + $0x24] sm:$0xf]
        %v941 = vld [vmem:[%s860 + $0x28] sm:$0xf]
        %v942 = vld [vmem:[%s860 + $0x2c] sm:$0xf]
        %v943 = vld [vmem:[%s860 + $0x30] sm:$0xf]
        %v944 = vld [vmem:[%s860 + $0x34] sm:$0xf]
        %v945 = vld [vmem:[%s860 + $0x38] sm:$0xf]
        %v946 = vld [vmem:[%s860 + $0x3c] sm:$0xf]
        %v947 = vld [vmem:[%s874] sm:$0x1]
        %v948 = vld [vmem:[%s874 + $0x1] sm:$0x1]
        %v949 = vld [vmem:[%s874 + $0x2] sm:$0x1]
        %v950 = vld [vmem:[%s874 + $0x3] sm:$0x1]
        %v955 = vperm.slane %v947, 0
        %v956 = vperm.slane %v948, 0
        %v957 = vperm.slane %v949, 0
        %v958 = vperm.slane %v950, 0
        %v967 = vunpack.c.l.b16 %v931
        %v968 = vunpack.c.l.b16 %v932
        %v969 = vunpack.c.l.b16 %v933
        %v970 = vunpack.c.l.b16 %v934
        %v971 = vpack.c.b16 %v968, %v967
        %v972 = vpack.c.b16 %v970, %v969
        %vm975 = vcmask 261120
        %v977 = vsel %vm975, %v930, 0
        %979 = vmatpush.bf16.msra.mxu0 0
        %980 = vmatpush.bf16.msra.mxu0 0
        %981 = vmatpush.bf16.msra.mxu0 0
        %982 = vmatpush.bf16.msra.mxu0 0
        %983 = vmatpush.bf16.msra.mxu0 0
        %984 = vmatpush.bf16.msra.mxu0 0
        %985 = vmatpush.bf16.msra.mxu0 %v972
        %986 = vmatpush.bf16.msra.mxu0 %v971
        %987 = vmatmul.bf16.gmra.mxu0 %v977
        %v988 = vpop.f32.mrf.mxu0
        %v989 = vadd.f32 %v955, %v988
        %v990 = vpop.f32.mrf.mxu0
        %991 = vdwg.mxu0
        %v996 = vunpack.c.l.b16 %v935
        %v997 = vunpack.c.l.b16 %v936
        %v998 = vunpack.c.l.b16 %v937
        %v999 = vunpack.c.l.b16 %v938
        %v1000 = vpack.c.b16 %v997, %v996
        %v1001 = vpack.c.b16 %v999, %v998
        %1004 = vmatpush.bf16.msra.mxu0 0
        %1005 = vmatpush.bf16.msra.mxu0 0
        %1006 = vmatpush.bf16.msra.mxu0 0
        %1007 = vmatpush.bf16.msra.mxu0 0
        %1008 = vmatpush.bf16.msra.mxu0 0
        %1009 = vmatpush.bf16.msra.mxu0 0
        %1010 = vmatpush.bf16.msra.mxu0 %v1001
        %1011 = vmatpush.bf16.msra.mxu0 %v1000
        %1012 = vmatmul.bf16.gmra.mxu0 %v977
        %v1013 = vpop.f32.mrf.mxu0
        %v1014 = vadd.f32 %v956, %v1013
        %v1015 = vpop.f32.mrf.mxu0
        %1016 = vdwg.mxu0
        %v1021 = vunpack.c.l.b16 %v939
        %v1022 = vunpack.c.l.b16 %v940
        %v1023 = vunpack.c.l.b16 %v941
        %v1024 = vunpack.c.l.b16 %v942
        %v1025 = vpack.c.b16 %v1022, %v1021
        %v1026 = vpack.c.b16 %v1024, %v1023
        %1029 = vmatpush.bf16.msra.mxu0 0
        %1030 = vmatpush.bf16.msra.mxu0 0
        %1031 = vmatpush.bf16.msra.mxu0 0
        %1032 = vmatpush.bf16.msra.mxu0 0
        %1033 = vmatpush.bf16.msra.mxu0 0
        %1034 = vmatpush.bf16.msra.mxu0 0
        %1035 = vmatpush.bf16.msra.mxu0 %v1026
        %1036 = vmatpush.bf16.msra.mxu0 %v1025
        %1037 = vmatmul.bf16.gmra.mxu0 %v977
        %v1038 = vpop.f32.mrf.mxu0
        %v1039 = vadd.f32 %v957, %v1038
        %v1040 = vpop.f32.mrf.mxu0
        %1041 = vdwg.mxu0
        %v1046 = vunpack.c.l.b16 %v943
        %v1047 = vunpack.c.l.b16 %v944
        %v1048 = vunpack.c.l.b16 %v945
        %v1049 = vunpack.c.l.b16 %v946
        %v1050 = vpack.c.b16 %v1047, %v1046
        %v1051 = vpack.c.b16 %v1049, %v1048
        %1054 = vmatpush.bf16.msra.mxu0 0
        %1055 = vmatpush.bf16.msra.mxu0 0
        %1056 = vmatpush.bf16.msra.mxu0 0
        %1057 = vmatpush.bf16.msra.mxu0 0
        %1058 = vmatpush.bf16.msra.mxu0 0
        %1059 = vmatpush.bf16.msra.mxu0 0
        %1060 = vmatpush.bf16.msra.mxu0 %v1051
        %1061 = vmatpush.bf16.msra.mxu0 %v1050
        %1062 = vmatmul.bf16.gmra.mxu0 %v977
        %v1063 = vpop.f32.mrf.mxu0
        %v1064 = vadd.f32 %v958, %v1063
        %v1065 = vpop.f32.mrf.mxu0
        %1066 = vdwg.mxu0
        %v1067 = vld [vmem:[%s865] sm:$0xf]
        %v1068 = vld [vmem:[%s865 + $0x4] sm:$0xf]
        %v1069 = vld [vmem:[%s865 + $0x8] sm:$0xf]
        %v1070 = vld [vmem:[%s865 + $0xc] sm:$0xf]
        %v1071 = vld [vmem:[%s865 + $0x10] sm:$0xf]
        %v1072 = vld [vmem:[%s865 + $0x14] sm:$0xf]
        %v1073 = vld [vmem:[%s865 + $0x18] sm:$0xf]
        %v1074 = vld [vmem:[%s865 + $0x1c] sm:$0xf]
        %v1075 = vld [vmem:[%s865 + $0x20] sm:$0xf]
        %v1076 = vld [vmem:[%s865 + $0x24] sm:$0xf]
        %v1077 = vld [vmem:[%s865 + $0x28] sm:$0xf]
        %v1078 = vld [vmem:[%s865 + $0x2c] sm:$0xf]
        %v1079 = vld [vmem:[%s865 + $0x30] sm:$0xf]
        %v1080 = vld [vmem:[%s865 + $0x34] sm:$0xf]
        %v1081 = vld [vmem:[%s865 + $0x38] sm:$0xf]
        %v1082 = vld [vmem:[%s865 + $0x3c] sm:$0xf]
        %v1083 = vld [vmem:[%s878] sm:$0x1]
        %v1084 = vld [vmem:[%s878 + $0x1] sm:$0x1]
        %v1085 = vld [vmem:[%s878 + $0x2] sm:$0x1]
        %v1086 = vld [vmem:[%s878 + $0x3] sm:$0x1]
        %v1091 = vperm.slane %v1083, 0
        %v1092 = vperm.slane %v1084, 0
        %v1093 = vperm.slane %v1085, 0
        %v1094 = vperm.slane %v1086, 0
        %v1103 = vunpack.c.l.b16 %v1067
        %v1104 = vunpack.c.l.b16 %v1068
        %v1105 = vunpack.c.l.b16 %v1069
        %v1106 = vunpack.c.l.b16 %v1070
        %v1107 = vpack.c.b16 %v1104, %v1103
        %v1108 = vpack.c.b16 %v1106, %v1105
        %1111 = vmatpush.bf16.msra.mxu0 0
        %1112 = vmatpush.bf16.msra.mxu0 0
        %1113 = vmatpush.bf16.msra.mxu0 0
        %1114 = vmatpush.bf16.msra.mxu0 0
        %1115 = vmatpush.bf16.msra.mxu0 0
        %1116 = vmatpush.bf16.msra.mxu0 0
        %1117 = vmatpush.bf16.msra.mxu0 %v1108
        %1118 = vmatpush.bf16.msra.mxu0 %v1107
        %1119 = vmatmul.bf16.gmra.mxu0 %v977
        %v1120 = vpop.f32.mrf.mxu0
        %v1121 = vadd.f32 %v1091, %v1120
        %v1122 = vpop.f32.mrf.mxu0
        %1123 = vdwg.mxu0
        %v1128 = vunpack.c.l.b16 %v1071
        %v1129 = vunpack.c.l.b16 %v1072
        %v1130 = vunpack.c.l.b16 %v1073
        %v1131 = vunpack.c.l.b16 %v1074
        %v1132 = vpack.c.b16 %v1129, %v1128
        %v1133 = vpack.c.b16 %v1131, %v1130
        %1136 = vmatpush.bf16.msra.mxu0 0
        %1137 = vmatpush.bf16.msra.mxu0 0
        %1138 = vmatpush.bf16.msra.mxu0 0
        %1139 = vmatpush.bf16.msra.mxu0 0
        %1140 = vmatpush.bf16.msra.mxu0 0
        %1141 = vmatpush.bf16.msra.mxu0 0
        %1142 = vmatpush.bf16.msra.mxu0 %v1133
        %1143 = vmatpush.bf16.msra.mxu0 %v1132
        %1144 = vmatmul.bf16.gmra.mxu0 %v977
        %v1145 = vpop.f32.mrf.mxu0
        %v1146 = vadd.f32 %v1092, %v1145
        %v1147 = vpop.f32.mrf.mxu0
        %1148 = vdwg.mxu0
        %v1153 = vunpack.c.l.b16 %v1075
        %v1154 = vunpack.c.l.b16 %v1076
        %v1155 = vunpack.c.l.b16 %v1077
        %v1156 = vunpack.c.l.b16 %v1078
        %v1157 = vpack.c.b16 %v1154, %v1153
        %v1158 = vpack.c.b16 %v1156, %v1155
        %1161 = vmatpush.bf16.msra.mxu0 0
        %1162 = vmatpush.bf16.msra.mxu0 0
        %1163 = vmatpush.bf16.msra.mxu0 0
        %1164 = vmatpush.bf16.msra.mxu0 0
        %1165 = vmatpush.bf16.msra.mxu0 0
        %1166 = vmatpush.bf16.msra.mxu0 0
        %1167 = vmatpush.bf16.msra.mxu0 %v1158
        %1168 = vmatpush.bf16.msra.mxu0 %v1157
        %1169 = vmatmul.bf16.gmra.mxu0 %v977
        %v1170 = vpop.f32.mrf.mxu0
        %v1171 = vadd.f32 %v1093, %v1170
        %v1172 = vpop.f32.mrf.mxu0
        %1173 = vdwg.mxu0
        %v1178 = vunpack.c.l.b16 %v1079
        %v1179 = vunpack.c.l.b16 %v1080
        %v1180 = vunpack.c.l.b16 %v1081
        %v1181 = vunpack.c.l.b16 %v1082
        %v1182 = vpack.c.b16 %v1179, %v1178
        %v1183 = vpack.c.b16 %v1181, %v1180
        %1186 = vmatpush.bf16.msra.mxu0 0
        %1187 = vmatpush.bf16.msra.mxu0 0
        %1188 = vmatpush.bf16.msra.mxu0 0
        %1189 = vmatpush.bf16.msra.mxu0 0
        %1190 = vmatpush.bf16.msra.mxu0 0
        %1191 = vmatpush.bf16.msra.mxu0 0
        %1192 = vmatpush.bf16.msra.mxu0 %v1183
        %1193 = vmatpush.bf16.msra.mxu0 %v1182
        %1194 = vmatmul.bf16.gmra.mxu0 %v977
        %v1195 = vpop.f32.mrf.mxu0
        %v1196 = vadd.f32 %v1094, %v1195
        %v1197 = vpop.f32.mrf.mxu0
        %1198 = vdwg.mxu0
        %v1199 = vld [vmem:[%s870] sm:$0xf]
        %v1200 = vld [vmem:[%s870 + $0x4] sm:$0xf]
        %v1201 = vld [vmem:[%s870 + $0x8] sm:$0xf]
        %v1202 = vld [vmem:[%s870 + $0xc] sm:$0xf]
        %v1203 = vld [vmem:[%s870 + $0x10] sm:$0xf]
        %v1204 = vld [vmem:[%s870 + $0x14] sm:$0xf]
        %v1205 = vld [vmem:[%s870 + $0x18] sm:$0xf]
        %v1206 = vld [vmem:[%s870 + $0x1c] sm:$0xf]
        %v1207 = vld [vmem:[%s870 + $0x20] sm:$0xf]
        %v1208 = vld [vmem:[%s870 + $0x24] sm:$0xf]
        %v1209 = vld [vmem:[%s870 + $0x28] sm:$0xf]
        %v1210 = vld [vmem:[%s870 + $0x2c] sm:$0xf]
        %v1211 = vld [vmem:[%s870 + $0x30] sm:$0xf]
        %v1212 = vld [vmem:[%s870 + $0x34] sm:$0xf]
        %v1213 = vld [vmem:[%s870 + $0x38] sm:$0xf]
        %v1214 = vld [vmem:[%s870 + $0x3c] sm:$0xf]
        %v1215 = vld [vmem:[%s882] sm:$0x1]
        %v1216 = vld [vmem:[%s882 + $0x1] sm:$0x1]
        %v1217 = vld [vmem:[%s882 + $0x2] sm:$0x1]
        %v1218 = vld [vmem:[%s882 + $0x3] sm:$0x1]
        %v1223 = vperm.slane %v1215, 0
        %v1224 = vperm.slane %v1216, 0
        %v1225 = vperm.slane %v1217, 0
        %v1226 = vperm.slane %v1218, 0
        %v1235 = vunpack.c.l.b16 %v1199
        %v1236 = vunpack.c.l.b16 %v1200
        %v1237 = vunpack.c.l.b16 %v1201
        %v1238 = vunpack.c.l.b16 %v1202
        %v1239 = vpack.c.b16 %v1236, %v1235
        %v1240 = vpack.c.b16 %v1238, %v1237
        %1243 = vmatpush.bf16.msra.mxu0 0
        %1244 = vmatpush.bf16.msra.mxu0 0
        %1245 = vmatpush.bf16.msra.mxu0 0
        %1246 = vmatpush.bf16.msra.mxu0 0
        %1247 = vmatpush.bf16.msra.mxu0 0
        %1248 = vmatpush.bf16.msra.mxu0 0
        %1249 = vmatpush.bf16.msra.mxu0 %v1240
        %1250 = vmatpush.bf16.msra.mxu0 %v1239
        %1251 = vmatmul.bf16.gmra.mxu0 %v977
        %v1252 = vpop.f32.mrf.mxu0
        %v1253 = vadd.f32 %v1223, %v1252
        %v1254 = vpop.f32.mrf.mxu0
        %1255 = vdwg.mxu0
        %v1260 = vunpack.c.l.b16 %v1203
        %v1261 = vunpack.c.l.b16 %v1204
        %v1262 = vunpack.c.l.b16 %v1205
        %v1263 = vunpack.c.l.b16 %v1206
        %v1264 = vpack.c.b16 %v1261, %v1260
        %v1265 = vpack.c.b16 %v1263, %v1262
        %1268 = vmatpush.bf16.msra.mxu0 0
        %1269 = vmatpush.bf16.msra.mxu0 0
        %1270 = vmatpush.bf16.msra.mxu0 0
        %1271 = vmatpush.bf16.msra.mxu0 0
        %1272 = vmatpush.bf16.msra.mxu0 0
        %1273 = vmatpush.bf16.msra.mxu0 0
        %1274 = vmatpush.bf16.msra.mxu0 %v1265
        %1275 = vmatpush.bf16.msra.mxu0 %v1264
        %1276 = vmatmul.bf16.gmra.mxu0 %v977
        %v1277 = vpop.f32.mrf.mxu0
        %v1278 = vadd.f32 %v1224, %v1277
        %v1279 = vpop.f32.mrf.mxu0
        %1280 = vdwg.mxu0
        %v1285 = vunpack.c.l.b16 %v1207
        %v1286 = vunpack.c.l.b16 %v1208
        %v1287 = vunpack.c.l.b16 %v1209
        %v1288 = vunpack.c.l.b16 %v1210
        %v1289 = vpack.c.b16 %v1286, %v1285
        %v1290 = vpack.c.b16 %v1288, %v1287
        %1293 = vmatpush.bf16.msra.mxu0 0
        %1294 = vmatpush.bf16.msra.mxu0 0
        %1295 = vmatpush.bf16.msra.mxu0 0
        %1296 = vmatpush.bf16.msra.mxu0 0
        %1297 = vmatpush.bf16.msra.mxu0 0
        %1298 = vmatpush.bf16.msra.mxu0 0
        %1299 = vmatpush.bf16.msra.mxu0 %v1290
        %1300 = vmatpush.bf16.msra.mxu0 %v1289
        %1301 = vmatmul.bf16.gmra.mxu0 %v977
        %v1302 = vpop.f32.mrf.mxu0
        %v1303 = vadd.f32 %v1225, %v1302
        %v1304 = vpop.f32.mrf.mxu0
        %1305 = vdwg.mxu0
        %v1310 = vunpack.c.l.b16 %v1211
        %v1311 = vunpack.c.l.b16 %v1212
        %v1312 = vunpack.c.l.b16 %v1213
        %v1313 = vunpack.c.l.b16 %v1214
        %v1314 = vpack.c.b16 %v1311, %v1310
        %v1315 = vpack.c.b16 %v1313, %v1312
        %1318 = vmatpush.bf16.msra.mxu0 0
        %1319 = vmatpush.bf16.msra.mxu0 0
        %1320 = vmatpush.bf16.msra.mxu0 0
        %1321 = vmatpush.bf16.msra.mxu0 0
        %1322 = vmatpush.bf16.msra.mxu0 0
        %1323 = vmatpush.bf16.msra.mxu0 0
        %1324 = vmatpush.bf16.msra.mxu0 %v1315
        %1325 = vmatpush.bf16.msra.mxu0 %v1314
        %1326 = vmatmul.bf16.gmra.mxu0 %v977
        %v1327 = vpop.f32.mrf.mxu0
        %v1328 = vadd.f32 %v1226, %v1327
        %v1329 = vpop.f32.mrf.mxu0
        %1330 = vdwg.mxu0
        %v1331 = vpack.c.bf16 %v989, %v989
        %v1332 = vpack.c.bf16 %v1014, %v1014
        %v1333 = vpack.c.bf16 %v1039, %v1039
        %v1334 = vpack.c.bf16 %v1064, %v1064
        %v1335 = vpack.c.bf16 %v1121, %v1121
        %v1336 = vpack.c.bf16 %v1146, %v1146
        %v1337 = vpack.c.bf16 %v1171, %v1171
        %v1338 = vpack.c.bf16 %v1196, %v1196
        %vm1339 = vcmask 64512
        %v1341 = vsel %vm1339, %v1331, 0
        %v1344 = vsel %vm1339, %v1335, 0
        %1346 = vmatpush.bf16.xpose.msra.mxu0 0
        %1347 = vmatpush.bf16.xpose.msra.mxu0 0
        %1348 = vmatpush.bf16.xpose.msra.mxu0 0
        %1349 = vmatpush.bf16.xpose.msra.mxu0 0
        %1350 = vmatpush.bf16.xpose.msra.mxu0 0
        %1351 = vmatpush.bf16.xpose.msra.mxu0 0
        %1352 = vmatpush.bf16.xpose.msra.mxu0 0
        %1353 = vmatpush.bf16.xpose.msra.mxu0 %v1344
        %1354 = vmatmul.bf16.gmra.mxu0 %v1341
        %v1355 = vpop.f32.mrf.mxu0
        %v1356 = vadd.f32 0.0, %v1355
        %v1357 = vpop.f32.mrf.mxu0
        %1358 = vdwg.mxu0
        %v1360 = vsel %vm1339, %v1332, 0
        %v1363 = vsel %vm1339, %v1336, 0
        %1365 = vmatpush.bf16.xpose.msra.mxu0 0
        %1366 = vmatpush.bf16.xpose.msra.mxu0 0
        %1367 = vmatpush.bf16.xpose.msra.mxu0 0
        %1368 = vmatpush.bf16.xpose.msra.mxu0 0
        %1369 = vmatpush.bf16.xpose.msra.mxu0 0
        %1370 = vmatpush.bf16.xpose.msra.mxu0 0
        %1371 = vmatpush.bf16.xpose.msra.mxu0 0
        %1372 = vmatpush.bf16.xpose.msra.mxu0 %v1363
        %1373 = vmatmul.bf16.gmra.mxu0 %v1360
        %v1374 = vpop.f32.mrf.mxu0
        %v1375 = vadd.f32 0.0, %v1374
        %v1376 = vpop.f32.mrf.mxu0
        %1377 = vdwg.mxu0
        %v1379 = vsel %vm1339, %v1333, 0
        %v1382 = vsel %vm1339, %v1337, 0
        %1384 = vmatpush.bf16.xpose.msra.mxu0 0
        %1385 = vmatpush.bf16.xpose.msra.mxu0 0
        %1386 = vmatpush.bf16.xpose.msra.mxu0 0
        %1387 = vmatpush.bf16.xpose.msra.mxu0 0
        %1388 = vmatpush.bf16.xpose.msra.mxu0 0
        %1389 = vmatpush.bf16.xpose.msra.mxu0 0
        %1390 = vmatpush.bf16.xpose.msra.mxu0 0
        %1391 = vmatpush.bf16.xpose.msra.mxu0 %v1382
        %1392 = vmatmul.bf16.gmra.mxu0 %v1379
        %v1393 = vpop.f32.mrf.mxu0
        %v1394 = vadd.f32 0.0, %v1393
        %v1395 = vpop.f32.mrf.mxu0
        %1396 = vdwg.mxu0
        %v1398 = vsel %vm1339, %v1334, 0
        %v1401 = vsel %vm1339, %v1338, 0
        %1403 = vmatpush.bf16.xpose.msra.mxu0 0
        %1404 = vmatpush.bf16.xpose.msra.mxu0 0
        %1405 = vmatpush.bf16.xpose.msra.mxu0 0
        %1406 = vmatpush.bf16.xpose.msra.mxu0 0
        %1407 = vmatpush.bf16.xpose.msra.mxu0 0
        %1408 = vmatpush.bf16.xpose.msra.mxu0 0
        %1409 = vmatpush.bf16.xpose.msra.mxu0 0
        %1410 = vmatpush.bf16.xpose.msra.mxu0 %v1401
        %1411 = vmatmul.bf16.gmra.mxu0 %v1398
        %v1412 = vpop.f32.mrf.mxu0
        %v1413 = vadd.f32 0.0, %v1412
        %v1414 = vpop.f32.mrf.mxu0
        %1415 = vdwg.mxu0
        %v1416 = vmul.f32 %v1356, 0.35355338
        %v1417 = vmul.f32 %v1375, 0.35355338
        %v1418 = vmul.f32 %v1394, 0.35355338
        %v1419 = vmul.f32 %v1413, 0.35355338
        %v1421 = vperm.slane %v929, 0
        %v1423 = vadd.f32 %v1416, %v1421
        %v1424 = vadd.f32 %v1417, %v1421
        %v1425 = vadd.f32 %v1418, %v1421
        %v1426 = vadd.f32 %v1419, %v1421
        %v1427 = vsel %vm1339, %v1423, -inf
        %1428 = vmax.xlane.f32.xlu0 %v1427
        %v1429 = vpop.xlane.xlu0 %1428
        %v1430 = vsel %vm1339, %v1424, -inf
        %1431 = vmax.xlane.f32.xlu0 %v1430
        %v1432 = vpop.xlane.xlu0 %1431
        %v1433 = vsel %vm1339, %v1425, -inf
        %1434 = vmax.xlane.f32.xlu0 %v1433
        %v1435 = vpop.xlane.xlu0 %1434
        %v1436 = vsel %vm1339, %v1426, -inf
        %1437 = vmax.xlane.f32.xlu0 %v1436
        %v1438 = vpop.xlane.xlu0 %1437
        %v1439 = vsub.f32 %v1423, %v1429
        %v1440 = vsub.f32 %v1424, %v1432
        %v1441 = vsub.f32 %v1425, %v1435
        %v1442 = vsub.f32 %v1426, %v1438
        %v1443 = vmul.f32 %v1439, 1.442695
        %v1444 = vpow.pop %v1443
        %v1445 = vmul.f32 %v1440, 1.442695
        %v1446 = vpow.pop %v1445
        %v1447 = vmul.f32 %v1441, 1.442695
        %v1448 = vpow.pop %v1447
        %v1449 = vmul.f32 %v1442, 1.442695
        %v1450 = vpow.pop %v1449
        %v1451 = vsel %vm1339, %v1444, 0.0
        %1452 = vadd.xlane.f32.xlu0 %v1451
        %v1453 = vpop.xlane.xlu0 %1452
        %v1454 = vsel %vm1339, %v1446, 0.0
        %1455 = vadd.xlane.f32.xlu0 %v1454
        %v1456 = vpop.xlane.xlu0 %1455
        %v1457 = vsel %vm1339, %v1448, 0.0
        %1458 = vadd.xlane.f32.xlu0 %v1457
        %v1459 = vpop.xlane.xlu0 %1458
        %v1460 = vsel %vm1339, %v1450, 0.0
        %1461 = vadd.xlane.f32.xlu0 %v1460
        %v1462 = vpop.xlane.xlu0 %1461
        %v1463 = vrcp.pop %v1453
        %v1464 = vrcp.pop %v1456
        %v1465 = vrcp.pop %v1459
        %v1466 = vrcp.pop %v1462
        %v1467 = vmul.f32 %v1444, %v1463
        %v1468 = vmul.f32 %v1446, %v1464
        %v1469 = vmul.f32 %v1448, %v1465
        %v1470 = vmul.f32 %v1450, %v1466
        %v1471 = vpack.c.bf16 %v1467, %v1467
        %v1472 = vpack.c.bf16 %v1468, %v1468
        %v1473 = vpack.c.bf16 %v1469, %v1469
        %v1474 = vpack.c.bf16 %v1470, %v1470
        %v1475 = vpack.c.bf16 %v1253, %v1253
        %v1476 = vpack.c.bf16 %v1278, %v1278
        %v1477 = vpack.c.bf16 %v1303, %v1303
        %v1478 = vpack.c.bf16 %v1328, %v1328
        %v1480 = vsel %vm1339, %v1471, 0
        %vm1482 = vcmask 1043456
        %v1484 = vsel %vm1482, %v1475, 0
        %1486 = vmatpush.bf16.msra.mxu0 0
        %1487 = vmatpush.bf16.msra.mxu0 0
        %1488 = vmatpush.bf16.msra.mxu0 0
        %1489 = vmatpush.bf16.msra.mxu0 0
        %1490 = vmatpush.bf16.msra.mxu0 0
        %1491 = vmatpush.bf16.msra.mxu0 0
        %1492 = vmatpush.bf16.msra.mxu0 0
        %1493 = vmatpush.bf16.msra.mxu0 %v1484
        %1494 = vmatmul.bf16.gmra.mxu0 %v1480
        %v1495 = vpop.f32.mrf.mxu0
        %v1496 = vadd.f32 0.0, %v1495
        %v1497 = vpop.f32.mrf.mxu0
        %1498 = vdwg.mxu0
        %v1500 = vsel %vm1339, %v1472, 0
        %v1503 = vsel %vm1482, %v1476, 0
        %1505 = vmatpush.bf16.msra.mxu0 0
        %1506 = vmatpush.bf16.msra.mxu0 0
        %1507 = vmatpush.bf16.msra.mxu0 0
        %1508 = vmatpush.bf16.msra.mxu0 0
        %1509 = vmatpush.bf16.msra.mxu0 0
        %1510 = vmatpush.bf16.msra.mxu0 0
        %1511 = vmatpush.bf16.msra.mxu0 0
        %1512 = vmatpush.bf16.msra.mxu0 %v1503
        %1513 = vmatmul.bf16.gmra.mxu0 %v1500
        %v1514 = vpop.f32.mrf.mxu0
        %v1515 = vadd.f32 0.0, %v1514
        %v1516 = vpop.f32.mrf.mxu0
        %1517 = vdwg.mxu0
        %v1519 = vsel %vm1339, %v1473, 0
        %v1522 = vsel %vm1482, %v1477, 0
        %1524 = vmatpush.bf16.msra.mxu0 0
        %1525 = vmatpush.bf16.msra.mxu0 0
        %1526 = vmatpush.bf16.msra.mxu0 0
        %1527 = vmatpush.bf16.msra.mxu0 0
        %1528 = vmatpush.bf16.msra.mxu0 0
        %1529 = vmatpush.bf16.msra.mxu0 0
        %1530 = vmatpush.bf16.msra.mxu0 0
        %1531 = vmatpush.bf16.msra.mxu0 %v1522
        %1532 = vmatmul.bf16.gmra.mxu0 %v1519
        %v1533 = vpop.f32.mrf.mxu0
        %v1534 = vadd.f32 0.0, %v1533
        %v1535 = vpop.f32.mrf.mxu0
        %1536 = vdwg.mxu0
        %v1538 = vsel %vm1339, %v1474, 0
        %v1541 = vsel %vm1482, %v1478, 0
        %1543 = vmatpush.bf16.msra.mxu0 0
        %1544 = vmatpush.bf16.msra.mxu0 0
        %1545 = vmatpush.bf16.msra.mxu0 0
        %1546 = vmatpush.bf16.msra.mxu0 0
        %1547 = vmatpush.bf16.msra.mxu0 0
        %1548 = vmatpush.bf16.msra.mxu0 0
        %1549 = vmatpush.bf16.msra.mxu0 0
        %1550 = vmatpush.bf16.msra.mxu0 %v1541
        %1551 = vmatmul.bf16.gmra.mxu0 %v1538
        %v1552 = vpop.f32.mrf.mxu0
        %v1553 = vadd.f32 0.0, %v1552
        %v1554 = vpop.f32.mrf.mxu0
        %1555 = vdwg.mxu0
        %v1556 = vpack.c.bf16 %v1496, %v1496
        %v1557 = vpack.c.bf16 %v1515, %v1515
        %v1558 = vpack.c.bf16 %v1534, %v1534
        %v1559 = vpack.c.bf16 %v1553, %v1553
        %v1560 = vld [vmem:[%s887] sm:$0xf]
        %v1561 = vld [vmem:[%s887 + $0x4] sm:$0xf]
        %v1562 = vld [vmem:[%s887 + $0x8] sm:$0xf]
        %v1563 = vld [vmem:[%s887 + $0xc] sm:$0xf]
        %v1565 = vsel %vm1339, %v1556, 0
        %v1568 = vsel %vm1482, %v1560, 0
        %1570 = vmatpush.bf16.msra.mxu0 0
        %1571 = vmatpush.bf16.msra.mxu0 0
        %1572 = vmatpush.bf16.msra.mxu0 0
        %1573 = vmatpush.bf16.msra.mxu0 0
        %1574 = vmatpush.bf16.msra.mxu0 0
        %1575 = vmatpush.bf16.msra.mxu0 0
        %1576 = vmatpush.bf16.msra.mxu0 0
        %1577 = vmatpush.bf16.msra.mxu0 %v1568
        %1578 = vmatmul.bf16.gmra.mxu0 %v1565
        %v1579 = vpop.f32.mrf.mxu0
        %v1580 = vadd.f32 0.0, %v1579
        %v1581 = vpop.f32.mrf.mxu0
        %1582 = vdwg.mxu0
        %v1584 = vsel %vm1339, %v1557, 0
        %v1587 = vsel %vm1482, %v1561, 0
        %1589 = vmatpush.bf16.msra.mxu0 0
        %1590 = vmatpush.bf16.msra.mxu0 0
        %1591 = vmatpush.bf16.msra.mxu0 0
        %1592 = vmatpush.bf16.msra.mxu0 0
        %1593 = vmatpush.bf16.msra.mxu0 0
        %1594 = vmatpush.bf16.msra.mxu0 0
        %1595 = vmatpush.bf16.msra.mxu0 0
        %1596 = vmatpush.bf16.msra.mxu0 %v1587
        %1597 = vmatmul.bf16.gmra.mxu0 %v1584
        %v1598 = vpop.f32.mrf.mxu0
        %v1599 = vadd.f32 0.0, %v1598
        %v1600 = vpop.f32.mrf.mxu0
        %1601 = vdwg.mxu0
        %v1603 = vsel %vm1339, %v1558, 0
        %v1606 = vsel %vm1482, %v1562, 0
        %1608 = vmatpush.bf16.msra.mxu0 0
        %1609 = vmatpush.bf16.msra.mxu0 0
        %1610 = vmatpush.bf16.msra.mxu0 0
        %1611 = vmatpush.bf16.msra.mxu0 0
        %1612 = vmatpush.bf16.msra.mxu0 0
        %1613 = vmatpush.bf16.msra.mxu0 0
        %1614 = vmatpush.bf16.msra.mxu0 0
        %1615 = vmatpush.bf16.msra.mxu0 %v1606
        %1616 = vmatmul.bf16.gmra.mxu0 %v1603
        %v1617 = vpop.f32.mrf.mxu0
        %v1618 = vadd.f32 0.0, %v1617
        %v1619 = vpop.f32.mrf.mxu0
        %1620 = vdwg.mxu0
        %v1622 = vsel %vm1339, %v1559, 0
        %v1625 = vsel %vm1482, %v1563, 0
        %1627 = vmatpush.bf16.msra.mxu0 0
        %1628 = vmatpush.bf16.msra.mxu0 0
        %1629 = vmatpush.bf16.msra.mxu0 0
        %1630 = vmatpush.bf16.msra.mxu0 0
        %1631 = vmatpush.bf16.msra.mxu0 0
        %1632 = vmatpush.bf16.msra.mxu0 0
        %1633 = vmatpush.bf16.msra.mxu0 0
        %1634 = vmatpush.bf16.msra.mxu0 %v1625
        %1635 = vmatmul.bf16.gmra.mxu0 %v1622
        %v1636 = vpop.f32.mrf.mxu0
        %v1637 = vadd.f32 0.0, %v1636
        %v1638 = vpop.f32.mrf.mxu0
        %1639 = vdwg.mxu0
        %v1640 = vsel %vm975, %v1580, 0.0
        %v1641 = vsel %vm975, %v1599, 0.0
        %v1642 = vadd.f32 %v1640, %v1641
        %v1643 = vsel %vm975, %v1618, 0.0
        %v1644 = vadd.f32 %v1642, %v1643
        %v1645 = vsel %vm975, %v1637, 0.0
        %v1646 = vadd.f32 %v1644, %v1645
        %v1647 = vld [vmem:[%s890] sm:$0x1]
        %v1649 = vperm.slane %v1647, 0
        %v1651 = vadd.f32 %v1646, %v1649
        %v1652 = vadd.f32 %v927, %v1651
        %v1653 = vsel %vm975, %v1652, 0.0
        %1654 = vadd.xlane.f32.xlu0 %v1653
        %v1655 = vpop.xlane.xlu0 %1654
        %v1656 = vrcp.pop 32.0
        %v1657 = vmul.f32 32.0, %v1656
        %v1658 = vsub.f32 1.0, %v1657
        %v1659 = vmul.f32 %v1656, %v1658
        %v1660 = vadd.f32 %v1656, %v1659
        %vm1661 = vweird.f32 %v1656
        %v1662 = vsel %vm1661, %v1656, %v1660
        %v1663 = vmul.f32 %v1655, %v1662
        %v1664 = vsub.f32 %v1652, %v1663
        %v1665 = vmul.f32 %v1664, %v1664
        %v1666 = vsel %vm975, %v1665, 0.0
        %1667 = vadd.xlane.f32.xlu0 %v1666
        %v1668 = vpop.xlane.xlu0 %1667
        %v1669 = vmul.f32 %v1668, %v1662
        %v1670 = vadd.f32 %v1669, 1e-05
        %v1671 = vrsqrt.pop %v1670
        %v1672 = vmul.f32 %v1671, %v1670
        %v1673 = vmul.f32 %v1672, %v1671
        %v1674 = vmul.f32 0.5, %v1673
        %v1675 = vsub.f32 1.5, %v1674
        %v1676 = vmul.f32 %v1671, %v1675
        %vm1677 = vweird.f32 %v1670
        %vm1678 = vweird.f32 %v1671
        %vm1679 = vmor %vm1677, %vm1678
        %v1680 = vsel %vm1679, %v1671, %v1676
        %v1681 = vmul.f32 %v1664, %v1680
        %v1682 = vld [vmem:[%s893] sm:$0x1]
        %v1684 = vperm.slane %v1682, 0
        %v1686 = vmul.f32 %v1681, %v1684
        %v1687 = vld [vmem:[%s896] sm:$0x1]
        %v1689 = vperm.slane %v1687, 0
        %v1691 = vadd.f32 %v1686, %v1689
        %v1692 = vpack.c.bf16 %v1691, %v1691
        %v1693 = vld [vmem:[%s901] sm:$0xf]
        %v1694 = vld [vmem:[%s901 + $0x4] sm:$0xf]
        %v1695 = vld [vmem:[%s901 + $0x8] sm:$0xf]
        %v1696 = vld [vmem:[%s901 + $0xc] sm:$0xf]
        %v1697 = vld [vmem:[%s904] sm:$0x1]
        %v1699 = vperm.slane %v1697, 0
        %v1705 = vunpack.c.l.b16 %v1693
        %v1706 = vunpack.c.l.b16 %v1694
        %v1707 = vunpack.c.l.b16 %v1695
        %v1708 = vunpack.c.l.b16 %v1696
        %v1709 = vpack.c.b16 %v1706, %v1705
        %v1710 = vpack.c.b16 %v1708, %v1707
        %v1714 = vsel %vm975, %v1692, 0
        %1716 = vmatpush.bf16.msra.mxu0 0
        %1717 = vmatpush.bf16.msra.mxu0 0
        %1718 = vmatpush.bf16.msra.mxu0 0
        %1719 = vmatpush.bf16.msra.mxu0 0
        %1720 = vmatpush.bf16.msra.mxu0 0
        %1721 = vmatpush.bf16.msra.mxu0 0
        %1722 = vmatpush.bf16.msra.mxu0 %v1710
        %1723 = vmatpush.bf16.msra.mxu0 %v1709
        %1724 = vmatmul.bf16.gmra.mxu0 %v1714
        %v1725 = vpop.f32.mrf.mxu0
        %v1726 = vadd.f32 %v1699, %v1725
        %v1727 = vpop.f32.mrf.mxu0
        %1728 = vdwg.mxu0
        %v1729 = vmax.f32 %v1726, 0.0
        %v1730 = vpack.c.bf16 %v1729, %v1729
        %v1731 = vld [vmem:[%s909] sm:$0xf]
        %v1732 = vld [vmem:[%s909 + $0x4] sm:$0xf]
        %v1733 = vld [vmem:[%s909 + $0x8] sm:$0xf]
        %v1734 = vld [vmem:[%s909 + $0xc] sm:$0xf]
        %v1735 = vld [vmem:[%s909 + $0x10] sm:$0xf]
        %v1736 = vld [vmem:[%s909 + $0x14] sm:$0xf]
        %v1737 = vld [vmem:[%s909 + $0x18] sm:$0xf]
        %v1738 = vld [vmem:[%s909 + $0x1c] sm:$0xf]
        %v1739 = vld [vmem:[%s912] sm:$0x1]
        %v1741 = vperm.slane %v1739, 0
        %v1751 = vunpack.c.l.b16 %v1731
        %v1752 = vunpack.c.l.b16 %v1732
        %v1753 = vunpack.c.l.b16 %v1733
        %v1754 = vunpack.c.l.b16 %v1734
        %v1755 = vunpack.c.l.b16 %v1735
        %v1756 = vunpack.c.l.b16 %v1736
        %v1757 = vunpack.c.l.b16 %v1737
        %v1758 = vunpack.c.l.b16 %v1738
        %v1759 = vpack.c.b16 %v1752, %v1751
        %v1760 = vpack.c.b16 %v1754, %v1753
        %v1761 = vpack.c.b16 %v1756, %v1755
        %v1762 = vpack.c.b16 %v1758, %v1757
        %vm1767 = vcmask 523264
        %v1769 = vsel %vm1767, %v1730, 0
        %1771 = vmatpush.bf16.msra.mxu0 0
        %1772 = vmatpush.bf16.msra.mxu0 0
        %1773 = vmatpush.bf16.msra.mxu0 0
        %1774 = vmatpush.bf16.msra.mxu0 0
        %1775 = vmatpush.bf16.msra.mxu0 %v1762
        %1776 = vmatpush.bf16.msra.mxu0 %v1761
        %1777 = vmatpush.bf16.msra.mxu0 %v1760
        %1778 = vmatpush.bf16.msra.mxu0 %v1759
        %1779 = vmatmul.bf16.gmra.mxu0 %v1769
        %v1780 = vpop.f32.mrf.mxu0
        %v1781 = vadd.f32 %v1741, %v1780
        %v1782 = vpop.f32.mrf.mxu0
        %1783 = vdwg.mxu0
        %v1784 = vadd.f32 %v1691, %v1781
        %v1785 = vsel %vm975, %v1784, 0.0
        %1786 = vadd.xlane.f32.xlu0 %v1785
        %v1787 = vpop.xlane.xlu0 %1786
        %v1788 = vmul.f32 %v1787, %v1662
        %v1789 = vsub.f32 %v1784, %v1788
        %v1790 = vmul.f32 %v1789, %v1789
        %v1791 = vsel %vm975, %v1790, 0.0
        %1792 = vadd.xlane.f32.xlu0 %v1791
        %v1793 = vpop.xlane.xlu0 %1792
        %v1794 = vmul.f32 %v1793, %v1662
        %v1795 = vadd.f32 %v1794, 1e-05
        %v1796 = vrsqrt.pop %v1795
        %v1797 = vmul.f32 %v1796, %v1795
        %v1798 = vmul.f32 %v1797, %v1796
        %v1799 = vmul.f32 0.5, %v1798
        %v1800 = vsub.f32 1.5, %v1799
        %v1801 = vmul.f32 %v1796, %v1800
        %vm1802 = vweird.f32 %v1795
        %vm1803 = vweird.f32 %v1796
        %vm1804 = vmor %vm1802, %vm1803
        %v1805 = vsel %vm1804, %v1796, %v1801
        %v1806 = vmul.f32 %v1789, %v1805
        %v1807 = vld [vmem:[%s915] sm:$0x1]
        %v1809 = vperm.slane %v1807, 0
        %v1811 = vmul.f32 %v1806, %v1809
        %v1812 = vld [vmem:[%s918] sm:$0x1]
        %v1814 = vperm.slane %v1812, 0
        %v1816 = vadd.f32 %v1811, %v1814
        %1817 = vst.msk [vmem:[#allocation2] sm:$0xff] %vm975, %v1816
        %p1818 = scmp.eq.s32.totalorder %s39, 1
        // Predicated region
        $region105: #{tpu_custom_call.1} parent=99 // pred_check
          %p1819 = pneg %p1818
        $region106: #{tpu_custom_call.1} parent=99 // pred_check_branch
          %1821 = sbr.rel (%p1819) target = $region108
        $region107: #{tpu_custom_call.1} parent=99 // pred_region
          %vm1822 = vcmask 261127
          %v1823 = vsel %vm1822, %v1816, 0.0
          %1824 = vadd.xlane.f32.xlu0 %v1823
          %v1825 = vpop.xlane.xlu0 %1824
          %v1826 = vmul.f32 %v1825, %v1662
          %v1827 = vsub.f32 %v1816, %v1826
          %v1828 = vmul.f32 %v1827, %v1827
          %v1829 = vsel %vm1822, %v1828, 0.0
          %1830 = vadd.xlane.f32.xlu0 %v1829
          %v1831 = vpop.xlane.xlu0 %1830
          %v1832 = vmul.f32 %v1831, %v1662
          %v1833 = vadd.f32 %v1832, 1e-05
          %v1834 = vrsqrt.pop %v1833
          %v1835 = vmul.f32 %v1834, %v1833
          %v1836 = vmul.f32 %v1835, %v1834
          %v1837 = vmul.f32 0.5, %v1836
          %v1838 = vsub.f32 1.5, %v1837
          %v1839 = vmul.f32 %v1834, %v1838
          %vm1840 = vweird.f32 %v1833
          %vm1841 = vweird.f32 %v1834
          %vm1842 = vmor %vm1840, %vm1841
          %v1843 = vsel %vm1842, %v1834, %v1839
          %v1844 = vmul.f32 %v1827, %v1843
          %v1845 = vld [vmem:[%s18] sm:$0x1]
          %v1847 = vperm.slane %v1845, 0
          %v1849 = vmul.f32 %v1844, %v1847
          %v1850 = vld [vmem:[%s19] sm:$0x1]
          %v1852 = vperm.slane %v1850, 0
          %v1854 = vadd.f32 %v1849, %v1852
          %1855 = vst.msk [vmem:[%s848 - $0x7] sm:$0x80] %vm1822, %v1854
        $region108: #{tpu_custom_call.1} parent=99 // pred_fallthru
          _
        %s1856 = sand.u32 %s564, 1
        %s1857 = scalar_lea.sflag [#allocation4], %s1856
        %s1858 = sand.u32 %s564, 1
        %s1859 = scalar_lea.vmem [#allocation3], %s1858
        // Predicated region
        $region109: #{tpu_custom_call.1} parent=99 // pred_check
          %p1860 = pneg %p574
        $region110: #{tpu_custom_call.1} parent=99 // pred_check_branch
          %1862 = sbr.rel (%p1860) target = $region112
        $region111: #{tpu_custom_call.1} parent=99 // pred_region
          %1864 = vsyncadd %s1857, 0
          %s1865 = scalar_lea.hbm %s20, %s38
          %s1867 = sshll.u32 %s1859, 4
          %s1868 = int_to_ptr.vmem [resolvable:$true] %s1867
          %s1869 = sshll.u32 %s1865, 4
          %s1870 = int_to_ptr.hbm [resolvable:$true] %s1869
          %1872 = dma.vmem_to_hbm [thread:$0]  %s1868, 16, %s1870, %s1857
        $region112: #{tpu_custom_call.1} parent=99 // pred_fallthru
          _
      $region100: #{tpu_custom_call.1} parent=5 // pred_fallthru
        _
      %p1873 = scmp.le.s32.totalorder 2, %s29
      // Predicated region
      $region113: #{tpu_custom_call.1} parent=5 // pred_check
        %p1874 = pneg %p1873
      $region114: #{tpu_custom_call.1} parent=5 // pred_check_branch
        %1876 = sbr.rel (%p1874) target = $region116
      $region115: #{tpu_custom_call.1} parent=5 // pred_region
        %s1877 = ssub.s32 %s29, 2
        // Predicated region
        $region117: #{tpu_custom_call.1} parent=115 // pred_check
          %p1878 = pneg %p580
        $region118: #{tpu_custom_call.1} parent=115 // pred_check_branch
          %1880 = sbr.rel (%p1878) target = $region120
        $region119: #{tpu_custom_call.1} parent=115 // pred_region
          %s1881 = sand.u32 %s565, 1
          %s1882 = scalar_lea.sflag [#allocation4], %s1881
          %s1883 = sand.u32 %s565, 1
          %s1884 = scalar_lea.vmem [#allocation3], %s1883
          %1886 = dma.done %s1882, 16
        $region120: #{tpu_custom_call.1} parent=115 // pred_fallthru
          _
      $region116: #{tpu_custom_call.1} parent=5 // pred_fallthru
        _
    $region6: #{tpu_custom_call.1} parent=1 // loop_footer
      %s33 = sadd.s32 1, %s29
    $region7: #{tpu_custom_call.1} parent=1 // loop_footer_branch
      %28 = sbr.rel target = $region3
    $region8: #{tpu_custom_call.1} parent=1 // loop_exit
      _
    %1887 = vsyncpa [#allocation4], 1
    %s1888 = scalar_lea.sflag [#allocation4], 1
    %1889 = vsyncpa %s1888, 1

</llo_original>
